<compile_context>
chip_gen: v6e
topology: v6e:2x2x1
jax: 0.10.0
libtpu: 0.0.40
codegen_flags: <defaults>
</compile_context>

<pallas_src>
import functools

import jax
import jax.numpy as jnp
from jax.experimental import pallas as pl
from jax.experimental.pallas import tpu as pltpu

LANE = 128


def _round_up(x, m):
    return ((x + m - 1) // m) * m


def _pick_tiles(n_pad):
    # k tile: biggest of (1024, 512, 256, 128) dividing n_pad.  Live set at
    # tm=512, tk=1024 (bf16 M tiles + bf16 x tiles + f32 scratch, double
    # buffered) is ~7 MiB -> fits the default scoped VMEM on every generation
    # including v7x (64 MiB physical).
    tk = n_pad
    for t in (1024, 512, 256, 128):
        if n_pad % t == 0:
            tk = t
            break
    # row tile: expose >= 2 row blocks where possible so the "parallel" axis
    # can feed both v7x TensorCores.
    tm = tk
    while n_pad // tm < 2 and tm > 128:
        if n_pad % (tm // 2) == 0:
            tm //= 2
        else:
            break
    return tm, tk


# -----------------------------------------------------------------------------
# Glue: dense propagation matrices for the magnetic signed Laplacian
# (normalization='sym', q=0.25, lambda_max=2.0, absolute_degree=True, K=1).
# With lambda_max=2 and the extra -1 self loops added in MSConv.__norm__, the
# effective real/imag edge weights are -Re(A_norm) / -Im(A_norm) where
# A_norm = D^{-1/2} A_sym D^{-1/2} (.) exp(i 2*pi*q (A - A^T)).
# -----------------------------------------------------------------------------
# TODO(synk): for large / sparse graphs this densification is the HBM scaling
# limit; the right fix is block-CSR M tiles driven by scalar-prefetch metadata.
def build_prop_matrices(edge_index, edge_weight, num_nodes, n_pad, q=0.25):
    row, col = edge_index[0], edge_index[1]
    if edge_weight is None:
        edge_weight = jnp.ones(edge_index.shape[1], dtype=jnp.float32)
    A = jnp.zeros((num_nodes, num_nodes), jnp.float32).at[row, col].add(edge_weight)
    A = A * (1.0 - jnp.eye(num_nodes, dtype=jnp.float32))       # remove self loops
    A_sym = 0.5 * (A + A.T)
    theta = A - A.T
    deg = jnp.sum(jnp.abs(A_sym), axis=1)                       # absolute_degree=True
    dinv = jnp.where(deg > 0, 1.0 / jnp.sqrt(deg), 0.0)
    phase = 2.0 * jnp.pi * q * theta
    norm = dinv[:, None] * A_sym * dinv[None, :]
    W_real = -(norm * jnp.cos(phase))
    W_imag = -(norm * jnp.sin(phase))
    # propagate: out[i] = sum_{e: col[e]=i} norm[e] * x[row[e]]  =>  M = W^T
    # NOTE: padded columns of M are zero, so padded node rows (which acquire a
    # bias value in the epilogue) can never leak into real node rows.
    Mr = jnp.zeros((n_pad, n_pad), jnp.float32).at[:num_nodes, :num_nodes].set(W_real.T)
    Mi = jnp.zeros((n_pad, n_pad), jnp.float32).at[:num_nodes, :num_nodes].set(W_imag.T)
    return Mr.astype(jnp.bfloat16), Mi.astype(jnp.bfloat16)


# -----------------------------------------------------------------------------
# Pallas kernels
# -----------------------------------------------------------------------------
def msconv_kernel(mr_ref, mi_ref, xrk_ref, xik_ref, xri_ref, xii_ref,
                  w_ref, b_ref, or_ref, oi_ref, t1r_ref, t1i_ref, *, apply_act):
    k = pl.program_id(1)
    f_pad = xri_ref.shape[1]

    # Reduction step: T1 = M @ x  (bf16 operands, f32 MXU accumulation).
    pr = jnp.dot(mr_ref[...], xrk_ref[...], preferred_element_type=jnp.float32)
    pi = jnp.dot(mi_ref[...], xik_ref[...], preferred_element_type=jnp.float32)

    @pl.when(k == 0)
    def _():                                   # first step: write, no zero-fill pass
        t1r_ref[...] = pr
        t1i_ref[...] = pi

    @pl.when(k != 0)
    def _():
        t1r_ref[...] += pr
        t1i_ref[...] += pi

    @pl.when(k == pl.num_programs(1) - 1)
    def _():
        # Epilogue: four bf16 dots against static slices of the resident
        # [W0; W1] block (no concatenates), f32 accumulation.
        w0 = w_ref[:f_pad, :]
        w1 = w_ref[f_pad:, :]
        out_rr = (jnp.dot(xri_ref[...], w0, preferred_element_type=jnp.float32)
                  + jnp.dot(t1r_ref[...].astype(jnp.bfloat16), w1,
                            preferred_element_type=jnp.float32))
        out_ii = (jnp.dot(xii_ref[...], w0, preferred_element_type=jnp.float32)
                  + jnp.dot(t1i_ref[...].astype(jnp.bfloat16), w1,
                            preferred_element_type=jnp.float32))
        b = b_ref[...]
        # Reference MSConv: out_imag_real == out_real_real, out_real_imag == out_imag_imag.
        out_real = out_rr - out_ii + b
        out_imag = out_rr + out_ii + b
        if apply_act:                          # complex ReLU: select on sign of real part
            mask = out_real >= 0
            out_real = jnp.where(mask, out_real, 0.0)
            out_imag = jnp.where(mask, out_imag, 0.0)
        or_ref[...] = out_real.astype(or_ref.dtype)
        oi_ref[...] = out_imag.astype(oi_ref.dtype)


def msconv_layer(mr, mi, xr, xi, w_stack, b, *, apply_act, tm, tk):
    """One MSConv layer.  xr/xi are bf16 (n_pad, f_pad); outputs are bf16."""
    n_pad, f_pad = xr.shape
    h_pad = w_stack.shape[1]
    grid = (n_pad // tm, n_pad // tk)

    return pl.pallas_call(
        functools.partial(msconv_kernel, apply_act=apply_act),
        out_shape=(jax.ShapeDtypeStruct((n_pad, h_pad), jnp.bfloat16),
                   jax.ShapeDtypeStruct((n_pad, h_pad), jnp.bfloat16)),
        grid_spec=pltpu.PrefetchScalarGridSpec(
            num_scalar_prefetch=0,
            grid=grid,
            in_specs=[
                pl.BlockSpec((tm, tk), lambda i, k: (i, k)),            # Mr tile
                pl.BlockSpec((tm, tk), lambda i, k: (i, k)),            # Mi tile
                pl.BlockSpec((tk, f_pad), lambda i, k: (k, 0)),         # xr (reduction view)
                pl.BlockSpec((tk, f_pad), lambda i, k: (k, 0)),         # xi (reduction view)
                pl.BlockSpec((tm, f_pad), lambda i, k: (i, 0)),         # xr (T0 row view)
                pl.BlockSpec((tm, f_pad), lambda i, k: (i, 0)),         # xi (T0 row view)
                pl.BlockSpec((2 * f_pad, h_pad), lambda i, k: (0, 0)),  # [W0; W1] (resident)
                pl.BlockSpec((1, h_pad), lambda i, k: (0, 0)),          # bias (resident)
            ],
            out_specs=[
                pl.BlockSpec((tm, h_pad), lambda i, k: (i, 0)),
                pl.BlockSpec((tm, h_pad), lambda i, k: (i, 0)),
            ],
            scratch_shapes=[pltpu.VMEM((tm, f_pad), jnp.float32),
                            pltpu.VMEM((tm, f_pad), jnp.float32)],
        ),
        compiler_params=pltpu.CompilerParams(
            dimension_semantics=("parallel", "arbitrary"),
            vmem_limit_bytes=32 * 1024 * 1024,
        ),
    )(mr, mi, xr, xi, xr, xi, w_stack, b)


def head_kernel(x_ref, w_ref, b_ref, o_ref):
    logits = (jnp.dot(x_ref[...], w_ref[...], preferred_element_type=jnp.float32)
              + b_ref[...])
    m = jnp.max(logits, axis=-1, keepdims=True)
    z = logits - m
    lse = jnp.log(jnp.sum(jnp.exp(z), axis=-1, keepdims=True))
    o_ref[...] = z - lse                                         # log_softmax(dim=1)


def head_layer(xq, w, b, *, tq):
    qp, fin = xq.shape
    lp = w.shape[1]
    return pl.pallas_call(
        head_kernel,
        out_shape=jax.ShapeDtypeStruct((qp, lp), jnp.float32),
        grid_spec=pltpu.PrefetchScalarGridSpec(
            num_scalar_prefetch=0,
            grid=(qp // tq,),
            in_specs=[pl.BlockSpec((tq, fin), lambda i: (i, 0)),
                      pl.BlockSpec((fin, lp), lambda i: (0, 0)),
                      pl.BlockSpec((1, lp), lambda i: (0, 0))],
            out_specs=pl.BlockSpec((tq, lp), lambda i: (i, 0)),
        ),
        compiler_params=pltpu.CompilerParams(
            dimension_semantics=("parallel",)),
    )(xq, w, b)


# -----------------------------------------------------------------------------
# Model: parameters + forward
# -----------------------------------------------------------------------------
def init_params(key, num_features, hidden, label_dim, layer=2, K=1):
    params = {"chebs": []}
    keys = jax.random.split(key, layer + 2)
    for l in range(layer):
        f_in = num_features if l == 0 else hidden
        s = jnp.sqrt(6.0 / (f_in + hidden))                      # glorot
        w = jax.random.uniform(keys[l], (K + 1, f_in, hidden),
                               minval=-s, maxval=s, dtype=jnp.float32)
        b = jnp.zeros((1, hidden), jnp.float32)                  # zeros(bias)
        params["chebs"].append((w, b))
    s = jnp.sqrt(1.0 / (4 * hidden))
    params["lin_w"] = jax.random.uniform(keys[layer], (4 * hidden, label_dim),
                                         minval=-s, maxval=s, dtype=jnp.float32)
    params["lin_b"] = jax.random.uniform(keys[layer + 1], (1, label_dim),
                                         minval=-s, maxval=s, dtype=jnp.float32)
    return params


def msgnn_forward(params, real, imag, edge_index, query_edges,
                  edge_weight=None, activation=True, q=0.25):
    n, num_features = real.shape
    hidden = params["chebs"][0][0].shape[2]
    label_dim = params["lin_w"].shape[1]

    n_pad = _round_up(max(n, 8), LANE)
    tm, tk = _pick_tiles(n_pad)
    f_pad0 = _round_up(num_features, LANE)
    h_pad = _round_up(hidden, LANE)
    l_pad = _round_up(label_dim, LANE)

    mr, mi = build_prop_matrices(edge_index, edge_weight, n, n_pad, q=q)

    xr = jnp.zeros((n_pad, f_pad0), jnp.bfloat16).at[:n, :num_features].set(
        real.astype(jnp.bfloat16))
    xi = jnp.zeros((n_pad, f_pad0), jnp.bfloat16).at[:n, :num_features].set(
        imag.astype(jnp.bfloat16))

    for (w, b) in params["chebs"]:
        f_in = w.shape[1]
        f_in_pad = xr.shape[1]
        w0 = jnp.zeros((f_in_pad, h_pad), jnp.float32).at[:f_in, :hidden].set(w[0])
        w1 = jnp.zeros((f_in_pad, h_pad), jnp.float32).at[:f_in, :hidden].set(w[1])
        w_stack = jnp.concatenate([w0, w1], axis=0).astype(jnp.bfloat16)  # (2F_pad, H_pad)
        b_pad = jnp.zeros((1, h_pad), jnp.float32).at[:, :hidden].set(b)
        xr, xi = msconv_layer(mr, mi, xr, xi, w_stack, b_pad,
                              apply_act=activation, tm=tm, tk=tk)

    # TODO(synk): for very large query counts, fuse this gather into the head
    # kernel via scalar-prefetched row indices instead of materializing x_cat.
    q0 = query_edges[:, 0]
    q1 = query_edges[:, 1]
    x_cat = jnp.concatenate([xr[q0], xr[q1], xi[q0], xi[q1]],
                            axis=-1).astype(jnp.float32)        # (Q, 4*H_pad)
    n_query = x_cat.shape[0]
    tq = 256 if n_query >= 256 else _round_up(n_query, 8)
    q_pad = _round_up(n_query, tq)
    x_cat = jnp.zeros((q_pad, 4 * h_pad), jnp.float32).at[:n_query].set(x_cat)

    # Pad the head weights so its output is lane-dense; padded label columns get
    # bias -1e30 => exp()==0, so log_softmax over the real classes is exact.
    lin_w, lin_b = params["lin_w"], params["lin_b"]
    w_head = jnp.zeros((4 * h_pad, l_pad), jnp.float32)
    for j in range(4):
        w_head = w_head.at[j * h_pad:j * h_pad + hidden, :label_dim].set(
            lin_w[j * hidden:(j + 1) * hidden, :])
    b_head = jnp.full((1, l_pad), -1e30, jnp.float32).at[:, :label_dim].set(lin_b)

    # TODO(synk): F.dropout(p=0.5) is identity at inference (training=False); omitted.
    log_prob = head_layer(x_cat, w_head, b_head, tq=tq)
    return log_prob[:n_query, :label_dim]


# -----------------------------------------------------------------------------
# Plain-JAX reference (mirrors the kernel numerics: bf16 M, bf16 activations,
# bf16 epilogue weights, f32 accumulation) used for a correctness check.
# -----------------------------------------------------------------------------
def msgnn_reference(params, real, imag, mr_bf, mi_bf, query_edges, activation=True):
    n = real.shape[0]
    hp = jax.lax.Precision.HIGHEST
    bf = jnp.bfloat16
    mr = mr_bf[:n, :n].astype(jnp.float32)
    mi = mi_bf[:n, :n].astype(jnp.float32)
    xr = real.astype(bf)
    xi = imag.astype(bf)
    for (w, b) in params["chebs"]:
        w0 = w[0].astype(bf).astype(jnp.float32)
        w1 = w[1].astype(bf).astype(jnp.float32)
        t1r = jnp.dot(mr, xr.astype(jnp.float32), precision=hp)
        t1i = jnp.dot(mi, xi.astype(jnp.float32), precision=hp)
        out_rr = (jnp.dot(xr.astype(jnp.float32), w0, precision=hp)
                  + jnp.dot(t1r.astype(bf).astype(jnp.float32), w1, precision=hp))
        out_ii = (jnp.dot(xi.astype(jnp.float32), w0, precision=hp)
                  + jnp.dot(t1i.astype(bf).astype(jnp.float32), w1, precision=hp))
        out_real = out_rr - out_ii + b
        out_imag = out_rr + out_ii + b
        if activation:
            mask = out_real >= 0
            out_real = jnp.where(mask, out_real, 0.0)
            out_imag = jnp.where(mask, out_imag, 0.0)
        xr, xi = out_real.astype(bf), out_imag.astype(bf)
    q0, q1 = query_edges[:, 0], query_edges[:, 1]
    x = jnp.concatenate([xr[q0], xr[q1], xi[q0], xi[q1]], axis=-1).astype(jnp.float32)
    logits = jnp.dot(x, params["lin_w"], precision=hp) + params["lin_b"]
    return jax.nn.log_softmax(logits, axis=1)


# -----------------------------------------------------------------------------
if __name__ == "__main__":
    key = jax.random.PRNGKey(0)
    k_feat, k_edge, k_w, k_q, k_param = jax.random.split(key, 5)

    N_NODES = 16
    NUM_FEATURES = 8
    HIDDEN = 8
    LABEL_DIM = 2
    N_EDGES = 40
    N_QUERY = 8

    real = jax.random.normal(k_feat, (N_NODES, NUM_FEATURES), jnp.float32)
    imag = jax.random.normal(jax.random.fold_in(k_feat, 1),
                             (N_NODES, NUM_FEATURES), jnp.float32)
    edge_index = jax.random.randint(k_edge, (2, N_EDGES), 0, N_NODES, jnp.int32)
    edge_weight = jnp.sign(jax.random.normal(k_w, (N_EDGES,), jnp.float32)) * \
        (0.5 + jax.random.uniform(jax.random.fold_in(k_w, 1), (N_EDGES,)))
    query_edges = jax.random.randint(k_q, (N_QUERY, 2), 0, N_NODES, jnp.int32)

    params = init_params(k_param, NUM_FEATURES, HIDDEN, LABEL_DIM, layer=2, K=1)

    log_prob = msgnn_forward(params, real, imag, edge_index, query_edges,
                             edge_weight=edge_weight, activation=True)
    log_prob = jax.block_until_ready(log_prob)

    assert log_prob.shape == (N_QUERY, LABEL_DIM)
    assert bool(jnp.all(jnp.isfinite(log_prob)))
    # rows of exp(log_prob) must sum to 1
    assert bool(jnp.allclose(jnp.sum(jnp.exp(log_prob), axis=1), 1.0, atol=1e-3))

    # compare against plain-JAX reference with the same (bf16) propagation matrices
    n_pad = _round_up(max(N_NODES, 8), LANE)
    mr_bf, mi_bf = build_prop_matrices(edge_index, edge_weight, N_NODES, n_pad, q=0.25)
    ref = msgnn_reference(params, real, imag, mr_bf, mi_bf, query_edges, activation=True)
    max_err = float(jnp.max(jnp.abs(log_prob - ref)))
    assert max_err < 5e-2, f"mismatch vs reference: {max_err}"

    print("KERNEL_OK")
</pallas_src>

<mosaic_0001>
module attributes {stable_mosaic.version = 11 : i64} {
  func.func @msconv_kernel(%arg0: i32, %arg1: i32, %arg2: memref<128x128xbf16, #tpu.memory_space<vmem>>, %arg3: memref<128x128xbf16, #tpu.memory_space<vmem>>, %arg4: memref<128x128xbf16, #tpu.memory_space<vmem>>, %arg5: memref<128x128xbf16, #tpu.memory_space<vmem>>, %arg6: memref<128x128xbf16, #tpu.memory_space<vmem>>, %arg7: memref<128x128xbf16, #tpu.memory_space<vmem>>, %arg8: memref<256x128xbf16, #tpu.memory_space<vmem>>, %arg9: memref<1x128xf32, #tpu.memory_space<vmem>>, %arg10: memref<128x128xbf16, #tpu.memory_space<vmem>>, %arg11: memref<128x128xbf16, #tpu.memory_space<vmem>>, %arg12: memref<128x128xf32, #tpu.memory_space<vmem>>, %arg13: memref<128x128xf32, #tpu.memory_space<vmem>>) attributes {dimension_semantics = [#tpu.dimension_semantics<parallel>, #tpu.dimension_semantics<arbitrary>], iteration_bounds = array<i64: 1, 1>, scalar_prefetch = 0 : i64, scratch_operands = 2 : i64, tpu.core_type = #tpu.core_type<tc>, window_params = [{transform_indices = @transform_0, window_bounds = array<i64: 128, 128>}, {transform_indices = @transform_1, window_bounds = array<i64: 128, 128>}, {transform_indices = @transform_2, window_bounds = array<i64: 128, 128>}, {transform_indices = @transform_3, window_bounds = array<i64: 128, 128>}, {transform_indices = @transform_4, window_bounds = array<i64: 128, 128>}, {transform_indices = @transform_5, window_bounds = array<i64: 128, 128>}, {pipeline_mode = #tpu.pipeline_mode<synchronous>, transform_indices = @transform_6, window_bounds = array<i64: 256, 128>}, {pipeline_mode = #tpu.pipeline_mode<synchronous>, transform_indices = @transform_7, window_bounds = array<i64: 1, 128>}, {transform_indices = @transform_8, window_bounds = array<i64: 128, 128>}, {transform_indices = @transform_9, window_bounds = array<i64: 128, 128>}]} {
    %c0 = arith.constant 0 : index
    %c0_0 = arith.constant 0 : index
    %0 = vector.load %arg2[%c0, %c0_0] : memref<128x128xbf16, #tpu.memory_space<vmem>>, vector<128x128xbf16>
    %c0_1 = arith.constant 0 : index
    %c0_2 = arith.constant 0 : index
    %1 = vector.load %arg4[%c0_1, %c0_2] : memref<128x128xbf16, #tpu.memory_space<vmem>>, vector<128x128xbf16>
    %cst = arith.constant dense<0.000000e+00> : vector<128x128xf32>
    %2 = tpu.matmul %0, %1, %cst {dimension_numbers = #tpu.dot_dimension_numbers<[1], [0], [0], [1], [0, 0, 1, 1], [], []>} : vector<128x128xbf16>, vector<128x128xbf16>, vector<128x128xf32> -> vector<128x128xf32>
    %c0_3 = arith.constant 0 : index
    %c0_4 = arith.constant 0 : index
    %3 = vector.load %arg3[%c0_3, %c0_4] : memref<128x128xbf16, #tpu.memory_space<vmem>>, vector<128x128xbf16>
    %c0_5 = arith.constant 0 : index
    %c0_6 = arith.constant 0 : index
    %4 = vector.load %arg5[%c0_5, %c0_6] : memref<128x128xbf16, #tpu.memory_space<vmem>>, vector<128x128xbf16>
    %cst_7 = arith.constant dense<0.000000e+00> : vector<128x128xf32>
    %5 = tpu.matmul %3, %4, %cst_7 {dimension_numbers = #tpu.dot_dimension_numbers<[1], [0], [0], [1], [0, 0, 1, 1], [], []>} : vector<128x128xbf16>, vector<128x128xbf16>, vector<128x128xf32> -> vector<128x128xf32>
    %c0_i32 = arith.constant 0 : i32
    %6 = arith.cmpi eq, %arg1, %c0_i32 : i32
    %7 = arith.extui %6 : i1 to i32
    %c0_i32_8 = arith.constant 0 : i32
    %8 = arith.cmpi ne, %7, %c0_i32_8 : i32
    scf.if %8 {
      %c0_13 = arith.constant 0 : index
      %c0_14 = arith.constant 0 : index
      %15 = vector.load %arg12[%c0_13, %c0_14] : memref<128x128xf32, #tpu.memory_space<vmem>>, vector<128x128xf32>
      tpu.vector_store %arg12[%c0_13, %c0_14], %2 {strides = array<i32>} : memref<128x128xf32, #tpu.memory_space<vmem>>, vector<128x128xf32>,
      %c0_15 = arith.constant 0 : index
      %c0_16 = arith.constant 0 : index
      %16 = vector.load %arg13[%c0_15, %c0_16] : memref<128x128xf32, #tpu.memory_space<vmem>>, vector<128x128xf32>
      tpu.vector_store %arg13[%c0_15, %c0_16], %5 {strides = array<i32>} : memref<128x128xf32, #tpu.memory_space<vmem>>, vector<128x128xf32>,
    } else {
    }
    %c0_i32_9 = arith.constant 0 : i32
    %9 = arith.cmpi ne, %arg1, %c0_i32_9 : i32
    %10 = arith.extui %9 : i1 to i32
    %c0_i32_10 = arith.constant 0 : i32
    %11 = arith.cmpi ne, %10, %c0_i32_10 : i32
    scf.if %11 {
      %c0_13 = arith.constant 0 : index
      %c0_14 = arith.constant 0 : index
      %15 = vector.load %arg12[%c0_13, %c0_14] : memref<128x128xf32, #tpu.memory_space<vmem>>, vector<128x128xf32>
      %16 = arith.addf %15, %2 : vector<128x128xf32>
      %c0_15 = arith.constant 0 : index
      %c0_16 = arith.constant 0 : index
      %17 = vector.load %arg12[%c0_15, %c0_16] : memref<128x128xf32, #tpu.memory_space<vmem>>, vector<128x128xf32>
      tpu.vector_store %arg12[%c0_15, %c0_16], %16 {strides = array<i32>} : memref<128x128xf32, #tpu.memory_space<vmem>>, vector<128x128xf32>,
      %c0_17 = arith.constant 0 : index
      %c0_18 = arith.constant 0 : index
      %18 = vector.load %arg13[%c0_17, %c0_18] : memref<128x128xf32, #tpu.memory_space<vmem>>, vector<128x128xf32>
      %19 = arith.addf %18, %5 : vector<128x128xf32>
      %c0_19 = arith.constant 0 : index
      %c0_20 = arith.constant 0 : index
      %20 = vector.load %arg13[%c0_19, %c0_20] : memref<128x128xf32, #tpu.memory_space<vmem>>, vector<128x128xf32>
      tpu.vector_store %arg13[%c0_19, %c0_20], %19 {strides = array<i32>} : memref<128x128xf32, #tpu.memory_space<vmem>>, vector<128x128xf32>,
    } else {
    }
    %c0_i32_11 = arith.constant 0 : i32
    %12 = arith.cmpi eq, %arg1, %c0_i32_11 : i32
    %13 = arith.extui %12 : i1 to i32
    %c0_i32_12 = arith.constant 0 : i32
    %14 = arith.cmpi ne, %13, %c0_i32_12 : i32
    scf.if %14 {
      %c0_13 = arith.constant 0 : index
      %c0_14 = arith.constant 0 : index
      %15 = vector.load %arg8[%c0_13, %c0_14] : memref<256x128xbf16, #tpu.memory_space<vmem>>, vector<128x128xbf16>
      %c128 = arith.constant 128 : index
      %c0_15 = arith.constant 0 : index
      %16 = vector.load %arg8[%c128, %c0_15] : memref<256x128xbf16, #tpu.memory_space<vmem>>, vector<128x128xbf16>
      %c0_16 = arith.constant 0 : index
      %c0_17 = arith.constant 0 : index
      %17 = vector.load %arg6[%c0_16, %c0_17] : memref<128x128xbf16, #tpu.memory_space<vmem>>, vector<128x128xbf16>
      %cst_18 = arith.constant dense<0.000000e+00> : vector<128x128xf32>
      %18 = tpu.matmul %17, %15, %cst_18 {dimension_numbers = #tpu.dot_dimension_numbers<[1], [0], [0], [1], [0, 0, 1, 1], [], []>} : vector<128x128xbf16>, vector<128x128xbf16>, vector<128x128xf32> -> vector<128x128xf32>
      %c0_19 = arith.constant 0 : index
      %c0_20 = arith.constant 0 : index
      %19 = vector.load %arg12[%c0_19, %c0_20] : memref<128x128xf32, #tpu.memory_space<vmem>>, vector<128x128xf32>
      %20 = arith.truncf %19 : vector<128x128xf32> to vector<128x128xbf16>
      %cst_21 = arith.constant dense<0.000000e+00> : vector<128x128xf32>
      %21 = tpu.matmul %20, %16, %cst_21 {dimension_numbers = #tpu.dot_dimension_numbers<[1], [0], [0], [1], [0, 0, 1, 1], [], []>} : vector<128x128xbf16>, vector<128x128xbf16>, vector<128x128xf32> -> vector<128x128xf32>
      %22 = arith.addf %18, %21 : vector<128x128xf32>
      %c0_22 = arith.constant 0 : index
      %c0_23 = arith.constant 0 : index
      %23 = vector.load %arg7[%c0_22, %c0_23] : memref<128x128xbf16, #tpu.memory_space<vmem>>, vector<128x128xbf16>
      %cst_24 = arith.constant dense<0.000000e+00> : vector<128x128xf32>
      %24 = tpu.matmul %23, %15, %cst_24 {dimension_numbers = #tpu.dot_dimension_numbers<[1], [0], [0], [1], [0, 0, 1, 1], [], []>} : vector<128x128xbf16>, vector<128x128xbf16>, vector<128x128xf32> -> vector<128x128xf32>
      %c0_25 = arith.constant 0 : index
      %c0_26 = arith.constant 0 : index
      %25 = vector.load %arg13[%c0_25, %c0_26] : memref<128x128xf32, #tpu.memory_space<vmem>>, vector<128x128xf32>
      %26 = arith.truncf %25 : vector<128x128xf32> to vector<128x128xbf16>
      %cst_27 = arith.constant dense<0.000000e+00> : vector<128x128xf32>
      %27 = tpu.matmul %26, %16, %cst_27 {dimension_numbers = #tpu.dot_dimension_numbers<[1], [0], [0], [1], [0, 0, 1, 1], [], []>} : vector<128x128xbf16>, vector<128x128xbf16>, vector<128x128xf32> -> vector<128x128xf32>
      %28 = arith.addf %24, %27 : vector<128x128xf32>
      %c0_28 = arith.constant 0 : index
      %c0_29 = arith.constant 0 : index
      %29 = vector.load %arg9[%c0_28, %c0_29] : memref<1x128xf32, #tpu.memory_space<vmem>>, vector<1x128xf32>
      %30 = arith.subf %22, %28 : vector<128x128xf32>
      %31 = vector.broadcast %29 : vector<1x128xf32> to vector<128x128xf32>
      %32 = arith.addf %30, %31 : vector<128x128xf32>
      %33 = arith.addf %22, %28 : vector<128x128xf32>
      %34 = vector.broadcast %29 : vector<1x128xf32> to vector<128x128xf32>
      %35 = arith.addf %33, %34 : vector<128x128xf32>
      %cst_30 = arith.constant 0.000000e+00 : f32
      %36 = vector.broadcast %cst_30 : f32 to vector<128x128xf32>
      %37 = arith.cmpf oge, %32, %36 : vector<128x128xf32>
      %cst_31 = arith.constant 0.000000e+00 : f32
      %38 = vector.broadcast %cst_31 : f32 to vector<128x128xf32>
      %39 = arith.select %37, %32, %38 : vector<128x128xi1>, vector<128x128xf32>
      %cst_32 = arith.constant 0.000000e+00 : f32
      %40 = vector.broadcast %cst_32 : f32 to vector<128x128xf32>
      %41 = arith.select %37, %35, %40 : vector<128x128xi1>, vector<128x128xf32>
      %42 = arith.truncf %39 : vector<128x128xf32> to vector<128x128xbf16>
      %c0_33 = arith.constant 0 : index
      %c0_34 = arith.constant 0 : index
      %43 = vector.load %arg10[%c0_33, %c0_34] : memref<128x128xbf16, #tpu.memory_space<vmem>>, vector<128x128xbf16>
      tpu.vector_store %arg10[%c0_33, %c0_34], %42 {strides = array<i32>} : memref<128x128xbf16, #tpu.memory_space<vmem>>, vector<128x128xbf16>,
      %44 = arith.truncf %41 : vector<128x128xf32> to vector<128x128xbf16>
      %c0_35 = arith.constant 0 : index
      %c0_36 = arith.constant 0 : index
      %45 = vector.load %arg11[%c0_35, %c0_36] : memref<128x128xbf16, #tpu.memory_space<vmem>>, vector<128x128xbf16>
      tpu.vector_store %arg11[%c0_35, %c0_36], %44 {strides = array<i32>} : memref<128x128xbf16, #tpu.memory_space<vmem>>, vector<128x128xbf16>,
    } else {
    }
    return
  }
  func.func @transform_0(%arg0: i32, %arg1: i32) -> (i32, i32) {
    %c0_i32 = arith.constant 0 : i32
    return %arg0, %arg1 : i32, i32
  }
  func.func @transform_1(%arg0: i32, %arg1: i32) -> (i32, i32) {
    %c0_i32 = arith.constant 0 : i32
    return %arg0, %arg1 : i32, i32
  }
  func.func @transform_2(%arg0: i32, %arg1: i32) -> (i32, i32) {
    %c0_i32 = arith.constant 0 : i32
    %c0_i32_0 = arith.constant 0 : i32
    return %arg1, %c0_i32 : i32, i32
  }
  func.func @transform_3(%arg0: i32, %arg1: i32) -> (i32, i32) {
    %c0_i32 = arith.constant 0 : i32
    %c0_i32_0 = arith.constant 0 : i32
    return %arg1, %c0_i32 : i32, i32
  }
  func.func @transform_4(%arg0: i32, %arg1: i32) -> (i32, i32) {
    %c0_i32 = arith.constant 0 : i32
    %c0_i32_0 = arith.constant 0 : i32
    return %arg0, %c0_i32 : i32, i32
  }
  func.func @transform_5(%arg0: i32, %arg1: i32) -> (i32, i32) {
    %c0_i32 = arith.constant 0 : i32
    %c0_i32_0 = arith.constant 0 : i32
    return %arg0, %c0_i32 : i32, i32
  }
  func.func @transform_6(%arg0: i32, %arg1: i32) -> (i32, i32) {
    %c0_i32 = arith.constant 0 : i32
    %c0_i32_0 = arith.constant 0 : i32
    %c0_i32_1 = arith.constant 0 : i32
    return %c0_i32, %c0_i32_0 : i32, i32
  }
  func.func @transform_7(%arg0: i32, %arg1: i32) -> (i32, i32) {
    %c0_i32 = arith.constant 0 : i32
    %c0_i32_0 = arith.constant 0 : i32
    %c0_i32_1 = arith.constant 0 : i32
    return %c0_i32, %c0_i32_0 : i32, i32
  }
  func.func @transform_8(%arg0: i32, %arg1: i32) -> (i32, i32) {
    %c0_i32 = arith.constant 0 : i32
    %c0_i32_0 = arith.constant 0 : i32
    return %arg0, %c0_i32 : i32, i32
  }
  func.func @transform_9(%arg0: i32, %arg1: i32) -> (i32, i32) {
    %c0_i32 = arith.constant 0 : i32
    %c0_i32_0 = arith.constant 0 : i32
    return %arg0, %c0_i32 : i32, i32
  }
}

</mosaic_0001>

<llo_original>
// kernel: tpu_custom_call.1
$region0: #{tpu_custom_call.1}
  #allocation0 [shape = 'u32[]', space=smem, size = 0x4, offset = 0x4, fixed_abs, tag = 'smem constant byte address 0x4 - core index']
  #allocation1 [shape = 'u32[144,128]{1,0:T(1,128)}', space=vmem, size = 0x12000, scoped, tag = 'internal scratch']
  #allocation2 [shape = 'f32[128,128]{1,0:T(8,128)}', space=vmem, size = 0x10000, scoped, tag = 'scratch operand']
  #allocation3 [shape = 'f32[128,128]{1,0:T(8,128)}', space=vmem, size = 0x10000, scoped, tag = 'scratch operand']
  %s0 = inlined_call_operand.hbm [shape: bf16[128,128], index: 0, kind: input, shape index: {}]
  %s1 = inlined_call_operand.hbm [shape: bf16[128,128], index: 1, kind: input, shape index: {}]
  %s2 = inlined_call_operand.hbm [shape: bf16[128,128], index: 2, kind: input, shape index: {}]
  %s3 = inlined_call_operand.hbm [shape: bf16[128,128], index: 3, kind: input, shape index: {}]
  %s4 = inlined_call_operand.hbm [shape: bf16[128,128], index: 4, kind: input, shape index: {}]
  %s5 = inlined_call_operand.hbm [shape: bf16[128,128], index: 5, kind: input, shape index: {}]
  %s6 = inlined_call_operand.hbm [shape: bf16[256,128], index: 6, kind: input, shape index: {}]
  %s7 = inlined_call_operand.vmem [shape: f32[1,128], index: 7, kind: input, shape index: {}]
  %s8 = inlined_call_operand.hbm [shape: bf16[128,128], index: 8, kind: output, shape index: {0}]
  %s9 = inlined_call_operand.hbm [shape: bf16[128,128], index: 9, kind: output, shape index: {1}]
  %10 = xla_tuple %s8, %s9
  %s11 = sld [smem:[#allocation0]]
  $region90: #{tpu_custom_call.1} parent=0
    _
  %s13 = ssub.s32 1, %s11
  %s14 = scalar_select 0, %s13, %s11
  $region1: #{tpu_custom_call.1} parent=0
    #allocation4 [shape = 'u8[32768]{0}', space=vmem, size = 0x8000, scoped, tag = 'input window, operand 0, single buffered']
    #allocation5 [shape = 's32[1]{0}', space=sflag, size = 0x4, scoped, tag = 'scoped memory for tpu_custom_call.1']
    #allocation6 [shape = 's32[1]{0}', space=sflag, size = 0x4, scoped, tag = 'scoped memory for tpu_custom_call.1']
    #allocation7 [shape = 'u8[32768]{0}', space=vmem, size = 0x8000, scoped, tag = 'input window, operand 1, single buffered']
    #allocation8 [shape = 's32[1]{0}', space=sflag, size = 0x4, scoped, tag = 'scoped memory for tpu_custom_call.1']
    #allocation9 [shape = 'u8[32768]{0}', space=vmem, size = 0x8000, scoped, tag = 'input window, operand 2, single buffered']
    #allocation10 [shape = 'u8[32768]{0}', space=vmem, size = 0x8000, scoped, tag = 'input window, operand 3, single buffered']
    #allocation11 [shape = 's32[1]{0}', space=sflag, size = 0x4, scoped, tag = 'scoped memory for tpu_custom_call.1']
    #allocation12 [shape = 'u8[32768]{0}', space=vmem, size = 0x8000, scoped, tag = 'input window, operand 4, single buffered']
    #allocation13 [shape = 'u8[32768]{0}', space=vmem, size = 0x8000, scoped, tag = 'input window, operand 5, single buffered']
    #allocation14 [shape = 's32[1]{0}', space=sflag, size = 0x4, scoped, tag = 'scoped memory for tpu_custom_call.1']
    #allocation15 [shape = 'u8[65536]{0}', space=vmem, size = 0x10000, scoped, tag = 'input window, operand 6, single buffered']
    #allocation16 [shape = 'u8[32768]{0}', space=vmem, size = 0x8000, scoped, tag = 'output window, operand 0, single buffered']
    #allocation17 [shape = 'u8[32768]{0}', space=vmem, size = 0x8000, scoped, tag = 'output window, operand 1, single buffered']
    #allocation18 [shape = 's32[1]{0}', space=sflag, size = 0x4, scoped, tag = 'scoped memory for tpu_custom_call.1']
    %15 = vsyncpa [#allocation5], 0
    %16 = vsyncpa [#allocation8], 0
    %17 = vsyncpa [#allocation11], 0
    %18 = vsyncpa [#allocation14], 0
    %19 = vsyncpa [#allocation6], 0
    %20 = vsyncpa [#allocation18], 0
    // Predicated region
    $region2: #{tpu_custom_call.1} parent=1 // pred_check
      _
    $region3: #{tpu_custom_call.1} parent=1 // pred_check_branch
      %22 = sbr.rel (0) target = $region5
    $region4: #{tpu_custom_call.1} parent=1 // pred_region
      %s24 = ssub.s32 1024, 1024
      %25 = vsyncadd [#allocation5], %s24
      %s26 = sshll.u32 [#allocation4], 4
      %s27 = int_to_ptr.vmem [resolvable:$true] %s26
      %32 = dma.hbm_to_vmem [thread:$0]  %s0, 1024, %s27, [#allocation5], 64, 64, 4
    $region5: #{tpu_custom_call.1} parent=1 // pred_fallthru
      _
    // Predicated region
    $region6: #{tpu_custom_call.1} parent=1 // pred_check
      _
    $region7: #{tpu_custom_call.1} parent=1 // pred_check_branch
      %34 = sbr.rel (0) target = $region9
    $region8: #{tpu_custom_call.1} parent=1 // pred_region
      %s36 = ssub.s32 1024, 1024
      %37 = vsyncadd [#allocation8], %s36
      %s38 = sshll.u32 [#allocation7], 4
      %s39 = int_to_ptr.vmem [resolvable:$true] %s38
      %44 = dma.hbm_to_vmem [thread:$0]  %s1, 1024, %s39, [#allocation8], 64, 64, 4
    $region9: #{tpu_custom_call.1} parent=1 // pred_fallthru
      _
    // Predicated region
    $region10: #{tpu_custom_call.1} parent=1 // pred_check
      _
    $region11: #{tpu_custom_call.1} parent=1 // pred_check_branch
      %46 = sbr.rel (0) target = $region13
    $region12: #{tpu_custom_call.1} parent=1 // pred_region
      %s48 = ssub.s32 1024, 1024
      %49 = vsyncadd [#allocation8], %s48
      %s50 = sshll.u32 [#allocation9], 4
      %s51 = int_to_ptr.vmem [resolvable:$true] %s50
      %56 = dma.hbm_to_vmem [thread:$0]  %s2, 1024, %s51, [#allocation8], 64, 64, 4
    $region13: #{tpu_custom_call.1} parent=1 // pred_fallthru
      _
    // Predicated region
    $region14: #{tpu_custom_call.1} parent=1 // pred_check
      _
    $region15: #{tpu_custom_call.1} parent=1 // pred_check_branch
      %58 = sbr.rel (0) target = $region17
    $region16: #{tpu_custom_call.1} parent=1 // pred_region
      %s60 = ssub.s32 1024, 1024
      %61 = vsyncadd [#allocation11], %s60
      %s62 = sshll.u32 [#allocation10], 4
      %s63 = int_to_ptr.vmem [resolvable:$true] %s62
      %68 = dma.hbm_to_vmem [thread:$0]  %s3, 1024, %s63, [#allocation11], 64, 64, 4
    $region17: #{tpu_custom_call.1} parent=1 // pred_fallthru
      _
    // Predicated region
    $region18: #{tpu_custom_call.1} parent=1 // pred_check
      _
    $region19: #{tpu_custom_call.1} parent=1 // pred_check_branch
      %70 = sbr.rel (0) target = $region21
    $region20: #{tpu_custom_call.1} parent=1 // pred_region
      %s72 = ssub.s32 1024, 1024
      %73 = vsyncadd [#allocation11], %s72
      %s74 = sshll.u32 [#allocation12], 4
      %s75 = int_to_ptr.vmem [resolvable:$true] %s74
      %80 = dma.hbm_to_vmem [thread:$0]  %s4, 1024, %s75, [#allocation11], 64, 64, 4
    $region21: #{tpu_custom_call.1} parent=1 // pred_fallthru
      _
    // Predicated region
    $region22: #{tpu_custom_call.1} parent=1 // pred_check
      _
    $region23: #{tpu_custom_call.1} parent=1 // pred_check_branch
      %82 = sbr.rel (0) target = $region25
    $region24: #{tpu_custom_call.1} parent=1 // pred_region
      %s84 = ssub.s32 1024, 1024
      %85 = vsyncadd [#allocation14], %s84
      %s86 = sshll.u32 [#allocation13], 4
      %s87 = int_to_ptr.vmem [resolvable:$true] %s86
      %92 = dma.hbm_to_vmem [thread:$0]  %s5, 1024, %s87, [#allocation14], 64, 64, 4
    $region25: #{tpu_custom_call.1} parent=1 // pred_fallthru
      _
    // Predicated region
    $region26: #{tpu_custom_call.1} parent=1 // pred_check
      _
    $region27: #{tpu_custom_call.1} parent=1 // pred_check_branch
      %94 = sbr.rel (0) target = $region29
    $region28: #{tpu_custom_call.1} parent=1 // pred_region
      %s96 = ssub.s32 2048, 2048
      %97 = vsyncadd [#allocation14], %s96
      %s98 = sshll.u32 [#allocation15], 4
      %s99 = int_to_ptr.vmem [resolvable:$true] %s98
      %104 = dma.hbm_to_vmem [thread:$0]  %s6, 2048, %s99, [#allocation14], 64, 64, 4
    $region29: #{tpu_custom_call.1} parent=1 // pred_fallthru
      _
    // Predicated region
    $region30: #{tpu_custom_call.1} parent=1 // pred_check
      _
    $region31: #{tpu_custom_call.1} parent=1 // pred_check_branch
      %106 = sbr.rel (0) target = $region33
    $region32: #{tpu_custom_call.1} parent=1 // pred_region
      _
    $region33: #{tpu_custom_call.1} parent=1 // pred_fallthru
      _
    // Predicated region
    $region34: #{tpu_custom_call.1} parent=1 // pred_check
      _
    $region35: #{tpu_custom_call.1} parent=1 // pred_check_branch
      %108 = sbr.rel (0) target = $region37
    $region36: #{tpu_custom_call.1} parent=1 // pred_region
      %109 = dma.done [#allocation5], 1024
    $region37: #{tpu_custom_call.1} parent=1 // pred_fallthru
      _
    // Predicated region
    $region38: #{tpu_custom_call.1} parent=1 // pred_check
      _
    $region39: #{tpu_custom_call.1} parent=1 // pred_check_branch
      %111 = sbr.rel (0) target = $region41
    $region40: #{tpu_custom_call.1} parent=1 // pred_region
      %112 = dma.done [#allocation8], 1024
    $region41: #{tpu_custom_call.1} parent=1 // pred_fallthru
      _
    // Predicated region
    $region42: #{tpu_custom_call.1} parent=1 // pred_check
      _
    $region43: #{tpu_custom_call.1} parent=1 // pred_check_branch
      %114 = sbr.rel (0) target = $region45
    $region44: #{tpu_custom_call.1} parent=1 // pred_region
      %115 = dma.done [#allocation8], 1024
    $region45: #{tpu_custom_call.1} parent=1 // pred_fallthru
      _
    // Predicated region
    $region46: #{tpu_custom_call.1} parent=1 // pred_check
      _
    $region47: #{tpu_custom_call.1} parent=1 // pred_check_branch
      %117 = sbr.rel (0) target = $region49
    $region48: #{tpu_custom_call.1} parent=1 // pred_region
      %118 = dma.done [#allocation11], 1024
    $region49: #{tpu_custom_call.1} parent=1 // pred_fallthru
      _
    // Predicated region
    $region50: #{tpu_custom_call.1} parent=1 // pred_check
      _
    $region51: #{tpu_custom_call.1} parent=1 // pred_check_branch
      %120 = sbr.rel (0) target = $region53
    $region52: #{tpu_custom_call.1} parent=1 // pred_region
      %121 = dma.done [#allocation11], 1024
    $region53: #{tpu_custom_call.1} parent=1 // pred_fallthru
      _
    // Predicated region
    $region54: #{tpu_custom_call.1} parent=1 // pred_check
      _
    $region55: #{tpu_custom_call.1} parent=1 // pred_check_branch
      %123 = sbr.rel (0) target = $region57
    $region56: #{tpu_custom_call.1} parent=1 // pred_region
      %124 = dma.done [#allocation14], 1024
    $region57: #{tpu_custom_call.1} parent=1 // pred_fallthru
      _
    // Predicated region
    $region58: #{tpu_custom_call.1} parent=1 // pred_check
      _
    $region59: #{tpu_custom_call.1} parent=1 // pred_check_branch
      %126 = sbr.rel (0) target = $region61
    $region60: #{tpu_custom_call.1} parent=1 // pred_region
      %127 = dma.done [#allocation14], 2048
    $region61: #{tpu_custom_call.1} parent=1 // pred_fallthru
      _
    %v129 = vld [vmem:[#allocation4] sm:$0xf]
    %v130 = vld [vmem:[#allocation4 + $0x4] sm:$0xf]
    %v131 = vld [vmem:[#allocation4 + $0x8] sm:$0xf]
    %v132 = vld [vmem:[#allocation4 + $0xc] sm:$0xf]
    %v133 = vld [vmem:[#allocation4 + $0x10] sm:$0xf]
    %v134 = vld [vmem:[#allocation4 + $0x14] sm:$0xf]
    %v135 = vld [vmem:[#allocation4 + $0x18] sm:$0xf]
    %v136 = vld [vmem:[#allocation4 + $0x1c] sm:$0xf]
    %v137 = vld [vmem:[#allocation4 + $0x20] sm:$0xf]
    %v138 = vld [vmem:[#allocation4 + $0x24] sm:$0xf]
    %v139 = vld [vmem:[#allocation4 + $0x28] sm:$0xf]
    %v140 = vld [vmem:[#allocation4 + $0x2c] sm:$0xf]
    %v141 = vld [vmem:[#allocation4 + $0x30] sm:$0xf]
    %v142 = vld [vmem:[#allocation4 + $0x34] sm:$0xf]
    %v143 = vld [vmem:[#allocation4 + $0x38] sm:$0xf]
    %v144 = vld [vmem:[#allocation4 + $0x3c] sm:$0xf]
    %v145 = vld [vmem:[#allocation9] sm:$0xf]
    %v146 = vld [vmem:[#allocation9 + $0x4] sm:$0xf]
    %v147 = vld [vmem:[#allocation9 + $0x8] sm:$0xf]
    %v148 = vld [vmem:[#allocation9 + $0xc] sm:$0xf]
    %v149 = vld [vmem:[#allocation9 + $0x10] sm:$0xf]
    %v150 = vld [vmem:[#allocation9 + $0x14] sm:$0xf]
    %v151 = vld [vmem:[#allocation9 + $0x18] sm:$0xf]
    %v152 = vld [vmem:[#allocation9 + $0x1c] sm:$0xf]
    %v153 = vld [vmem:[#allocation9 + $0x20] sm:$0xf]
    %v154 = vld [vmem:[#allocation9 + $0x24] sm:$0xf]
    %v155 = vld [vmem:[#allocation9 + $0x28] sm:$0xf]
    %v156 = vld [vmem:[#allocation9 + $0x2c] sm:$0xf]
    %v157 = vld [vmem:[#allocation9 + $0x30] sm:$0xf]
    %v158 = vld [vmem:[#allocation9 + $0x34] sm:$0xf]
    %v159 = vld [vmem:[#allocation9 + $0x38] sm:$0xf]
    %v160 = vld [vmem:[#allocation9 + $0x3c] sm:$0xf]
    %v177 = vunpack.c.l.b16 %v129
    %v178 = vunpack.c.l.b16 %v130
    %v179 = vunpack.c.l.b16 %v131
    %v180 = vunpack.c.l.b16 %v132
    %v181 = vunpack.c.l.b16 %v133
    %v182 = vunpack.c.l.b16 %v134
    %v183 = vunpack.c.l.b16 %v135
    %v184 = vunpack.c.l.b16 %v136
    %v185 = vunpack.c.l.b16 %v137
    %v186 = vunpack.c.l.b16 %v138
    %v187 = vunpack.c.l.b16 %v139
    %v188 = vunpack.c.l.b16 %v140
    %v189 = vunpack.c.l.b16 %v141
    %v190 = vunpack.c.l.b16 %v142
    %v191 = vunpack.c.l.b16 %v143
    %v192 = vunpack.c.l.b16 %v144
    %v193 = vpack.c.b16 %v178, %v177
    %v194 = vpack.c.b16 %v180, %v179
    %v195 = vpack.c.b16 %v182, %v181
    %v196 = vpack.c.b16 %v184, %v183
    %v197 = vpack.c.b16 %v186, %v185
    %v198 = vpack.c.b16 %v188, %v187
    %v199 = vpack.c.b16 %v190, %v189
    %v200 = vpack.c.b16 %v192, %v191
    %v225 = vunpack.c.l.b16 %v145
    %v226 = vunpack.c.l.b16 %v146
    %v227 = vunpack.c.l.b16 %v147
    %v228 = vunpack.c.l.b16 %v148
    %v229 = vunpack.c.l.b16 %v149
    %v230 = vunpack.c.l.b16 %v150
    %v231 = vunpack.c.l.b16 %v151
    %v232 = vunpack.c.l.b16 %v152
    %v233 = vunpack.c.l.b16 %v153
    %v234 = vunpack.c.l.b16 %v154
    %v235 = vunpack.c.l.b16 %v155
    %v236 = vunpack.c.l.b16 %v156
    %v237 = vunpack.c.l.b16 %v157
    %v238 = vunpack.c.l.b16 %v158
    %v239 = vunpack.c.l.b16 %v159
    %v240 = vunpack.c.l.b16 %v160
    %v241 = vpack.c.b16 %v226, %v225
    %v242 = vpack.c.b16 %v228, %v227
    %v243 = vpack.c.b16 %v230, %v229
    %v244 = vpack.c.b16 %v232, %v231
    %v245 = vpack.c.b16 %v234, %v233
    %v246 = vpack.c.b16 %v236, %v235
    %v247 = vpack.c.b16 %v238, %v237
    %v248 = vpack.c.b16 %v240, %v239
    %257 = vmatprep.subr.bf16.mxu0 0
    %258 = vmatpush1.bf16.msra.mxu0 %v248
    %259 = vmatprep.subr.bf16.mxu0 0
    %260 = vmatpush1.bf16.msra.mxu0 %v247
    %261 = vmatprep.subr.bf16.mxu0 0
    %262 = vmatpush1.bf16.msra.mxu0 %v246
    %263 = vmatprep.subr.bf16.mxu0 0
    %264 = vmatpush1.bf16.msra.mxu0 %v245
    %265 = vmatprep.subr.bf16.mxu0 0
    %266 = vmatpush1.bf16.msra.mxu0 %v244
    %267 = vmatprep.subr.bf16.mxu0 0
    %268 = vmatpush1.bf16.msra.mxu0 %v243
    %269 = vmatprep.subr.bf16.mxu0 0
    %270 = vmatpush1.bf16.msra.mxu0 %v242
    %271 = vmatprep.subr.bf16.mxu0 0
    %272 = vmatpush1.bf16.msra.mxu0 %v241
    %273 = vmatprep.subr.bf16.mxu0 0
    %274 = vmatpush2.bf16.msra.mxu0 0
    %275 = vmatprep.subr.bf16.mxu0 0
    %276 = vmatpush2.bf16.msra.mxu0 0
    %277 = vmatprep.subr.bf16.mxu0 0
    %278 = vmatpush2.bf16.msra.mxu0 0
    %279 = vmatprep.subr.bf16.mxu0 0
    %280 = vmatpush2.bf16.msra.mxu0 0
    %281 = vmatprep.subr.bf16.mxu0 0
    %282 = vmatpush2.bf16.msra.mxu0 0
    %283 = vmatprep.subr.bf16.mxu0 0
    %284 = vmatpush2.bf16.msra.mxu0 0
    %285 = vmatprep.subr.bf16.mxu0 0
    %286 = vmatpush2.bf16.msra.mxu0 0
    %287 = vmatprep.subr.bf16.mxu0 0
    %288 = vmatpush2.bf16.msra.mxu0 0
    %289 = vmatprep.mubr.bf16.mxu0 0
    %290 = vmatmul.mubr.bf16.gmra.mxu0 %v193
    %v291 = vpop.f32.mrf.mxu0
    %v292 = vadd.f32 0.0, %v291
    %v293 = vpop.f32.mrf.mxu0
    %v294 = vpop.f32.mrf.mxu0
    %v295 = vadd.f32 0.0, %v294
    %v296 = vpop.f32.mrf.mxu0
    %297 = vmatprep.mubr.bf16.mxu0 0
    %298 = vmatmul.mubr.bf16.gmra.mxu0 %v194
    %v299 = vpop.f32.mrf.mxu0
    %v300 = vadd.f32 0.0, %v299
    %v301 = vpop.f32.mrf.mxu0
    %v302 = vpop.f32.mrf.mxu0
    %v303 = vadd.f32 0.0, %v302
    %v304 = vpop.f32.mrf.mxu0
    %305 = vmatprep.mubr.bf16.mxu0 0
    %306 = vmatmul.mubr.bf16.gmra.mxu0 %v195
    %v307 = vpop.f32.mrf.mxu0
    %v308 = vadd.f32 0.0, %v307
    %v309 = vpop.f32.mrf.mxu0
    %v310 = vpop.f32.mrf.mxu0
    %v311 = vadd.f32 0.0, %v310
    %v312 = vpop.f32.mrf.mxu0
    %313 = vmatprep.mubr.bf16.mxu0 0
    %314 = vmatmul.mubr.bf16.gmra.mxu0 %v196
    %v315 = vpop.f32.mrf.mxu0
    %v316 = vadd.f32 0.0, %v315
    %v317 = vpop.f32.mrf.mxu0
    %v318 = vpop.f32.mrf.mxu0
    %v319 = vadd.f32 0.0, %v318
    %v320 = vpop.f32.mrf.mxu0
    %321 = vmatprep.mubr.bf16.mxu0 0
    %322 = vmatmul.mubr.bf16.gmra.mxu0 %v197
    %v323 = vpop.f32.mrf.mxu0
    %v324 = vadd.f32 0.0, %v323
    %v325 = vpop.f32.mrf.mxu0
    %v326 = vpop.f32.mrf.mxu0
    %v327 = vadd.f32 0.0, %v326
    %v328 = vpop.f32.mrf.mxu0
    %329 = vmatprep.mubr.bf16.mxu0 0
    %330 = vmatmul.mubr.bf16.gmra.mxu0 %v198
    %v331 = vpop.f32.mrf.mxu0
    %v332 = vadd.f32 0.0, %v331
    %v333 = vpop.f32.mrf.mxu0
    %v334 = vpop.f32.mrf.mxu0
    %v335 = vadd.f32 0.0, %v334
    %v336 = vpop.f32.mrf.mxu0
    %337 = vmatprep.mubr.bf16.mxu0 0
    %338 = vmatmul.mubr.bf16.gmra.mxu0 %v199
    %v339 = vpop.f32.mrf.mxu0
    %v340 = vadd.f32 0.0, %v339
    %v341 = vpop.f32.mrf.mxu0
    %v342 = vpop.f32.mrf.mxu0
    %v343 = vadd.f32 0.0, %v342
    %v344 = vpop.f32.mrf.mxu0
    %345 = vmatprep.mubr.bf16.mxu0 0
    %346 = vmatmul.mubr.bf16.gmra.mxu0 %v200
    %v347 = vpop.f32.mrf.mxu0
    %v348 = vadd.f32 0.0, %v347
    %v349 = vpop.f32.mrf.mxu0
    %v350 = vpop.f32.mrf.mxu0
    %v351 = vadd.f32 0.0, %v350
    %v352 = vpop.f32.mrf.mxu0
    %353 = vdwg.mxu0
    %v354 = vld [vmem:[#allocation7] sm:$0xf]
    %v355 = vld [vmem:[#allocation7 + $0x4] sm:$0xf]
    %v356 = vld [vmem:[#allocation7 + $0x8] sm:$0xf]
    %v357 = vld [vmem:[#allocation7 + $0xc] sm:$0xf]
    %v358 = vld [vmem:[#allocation7 + $0x10] sm:$0xf]
    %v359 = vld [vmem:[#allocation7 + $0x14] sm:$0xf]
    %v360 = vld [vmem:[#allocation7 + $0x18] sm:$0xf]
    %v361 = vld [vmem:[#allocation7 + $0x1c] sm:$0xf]
    %v362 = vld [vmem:[#allocation7 + $0x20] sm:$0xf]
    %v363 = vld [vmem:[#allocation7 + $0x24] sm:$0xf]
    %v364 = vld [vmem:[#allocation7 + $0x28] sm:$0xf]
    %v365 = vld [vmem:[#allocation7 + $0x2c] sm:$0xf]
    %v366 = vld [vmem:[#allocation7 + $0x30] sm:$0xf]
    %v367 = vld [vmem:[#allocation7 + $0x34] sm:$0xf]
    %v368 = vld [vmem:[#allocation7 + $0x38] sm:$0xf]
    %v369 = vld [vmem:[#allocation7 + $0x3c] sm:$0xf]
    %v370 = vld [vmem:[#allocation10] sm:$0xf]
    %v371 = vld [vmem:[#allocation10 + $0x4] sm:$0xf]
    %v372 = vld [vmem:[#allocation10 + $0x8] sm:$0xf]
    %v373 = vld [vmem:[#allocation10 + $0xc] sm:$0xf]
    %v374 = vld [vmem:[#allocation10 + $0x10] sm:$0xf]
    %v375 = vld [vmem:[#allocation10 + $0x14] sm:$0xf]
    %v376 = vld [vmem:[#allocation10 + $0x18] sm:$0xf]
    %v377 = vld [vmem:[#allocation10 + $0x1c] sm:$0xf]
    %v378 = vld [vmem:[#allocation10 + $0x20] sm:$0xf]
    %v379 = vld [vmem:[#allocation10 + $0x24] sm:$0xf]
    %v380 = vld [vmem:[#allocation10 + $0x28] sm:$0xf]
    %v381 = vld [vmem:[#allocation10 + $0x2c] sm:$0xf]
    %v382 = vld [vmem:[#allocation10 + $0x30] sm:$0xf]
    %v383 = vld [vmem:[#allocation10 + $0x34] sm:$0xf]
    %v384 = vld [vmem:[#allocation10 + $0x38] sm:$0xf]
    %v385 = vld [vmem:[#allocation10 + $0x3c] sm:$0xf]
    %v402 = vunpack.c.l.b16 %v354
    %v403 = vunpack.c.l.b16 %v355
    %v404 = vunpack.c.l.b16 %v356
    %v405 = vunpack.c.l.b16 %v357
    %v406 = vunpack.c.l.b16 %v358
    %v407 = vunpack.c.l.b16 %v359
    %v408 = vunpack.c.l.b16 %v360
    %v409 = vunpack.c.l.b16 %v361
    %v410 = vunpack.c.l.b16 %v362
    %v411 = vunpack.c.l.b16 %v363
    %v412 = vunpack.c.l.b16 %v364
    %v413 = vunpack.c.l.b16 %v365
    %v414 = vunpack.c.l.b16 %v366
    %v415 = vunpack.c.l.b16 %v367
    %v416 = vunpack.c.l.b16 %v368
    %v417 = vunpack.c.l.b16 %v369
    %v418 = vpack.c.b16 %v403, %v402
    %v419 = vpack.c.b16 %v405, %v404
    %v420 = vpack.c.b16 %v407, %v406
    %v421 = vpack.c.b16 %v409, %v408
    %v422 = vpack.c.b16 %v411, %v410
    %v423 = vpack.c.b16 %v413, %v412
    %v424 = vpack.c.b16 %v415, %v414
    %v425 = vpack.c.b16 %v417, %v416
    %v450 = vunpack.c.l.b16 %v370
    %v451 = vunpack.c.l.b16 %v371
    %v452 = vunpack.c.l.b16 %v372
    %v453 = vunpack.c.l.b16 %v373
    %v454 = vunpack.c.l.b16 %v374
    %v455 = vunpack.c.l.b16 %v375
    %v456 = vunpack.c.l.b16 %v376
    %v457 = vunpack.c.l.b16 %v377
    %v458 = vunpack.c.l.b16 %v378
    %v459 = vunpack.c.l.b16 %v379
    %v460 = vunpack.c.l.b16 %v380
    %v461 = vunpack.c.l.b16 %v381
    %v462 = vunpack.c.l.b16 %v382
    %v463 = vunpack.c.l.b16 %v383
    %v464 = vunpack.c.l.b16 %v384
    %v465 = vunpack.c.l.b16 %v385
    %v466 = vpack.c.b16 %v451, %v450
    %v467 = vpack.c.b16 %v453, %v452
    %v468 = vpack.c.b16 %v455, %v454
    %v469 = vpack.c.b16 %v457, %v456
    %v470 = vpack.c.b16 %v459, %v458
    %v471 = vpack.c.b16 %v461, %v460
    %v472 = vpack.c.b16 %v463, %v462
    %v473 = vpack.c.b16 %v465, %v464
    %482 = vmatprep.subr.bf16.mxu0 0
    %483 = vmatpush1.bf16.msra.mxu0 %v473
    %484 = vmatprep.subr.bf16.mxu0 0
    %485 = vmatpush1.bf16.msra.mxu0 %v472
    %486 = vmatprep.subr.bf16.mxu0 0
    %487 = vmatpush1.bf16.msra.mxu0 %v471
    %488 = vmatprep.subr.bf16.mxu0 0
    %489 = vmatpush1.bf16.msra.mxu0 %v470
    %490 = vmatprep.subr.bf16.mxu0 0
    %491 = vmatpush1.bf16.msra.mxu0 %v469
    %492 = vmatprep.subr.bf16.mxu0 0
    %493 = vmatpush1.bf16.msra.mxu0 %v468
    %494 = vmatprep.subr.bf16.mxu0 0
    %495 = vmatpush1.bf16.msra.mxu0 %v467
    %496 = vmatprep.subr.bf16.mxu0 0
    %497 = vmatpush1.bf16.msra.mxu0 %v466
    %498 = vmatprep.subr.bf16.mxu0 0
    %499 = vmatpush2.bf16.msra.mxu0 0
    %500 = vmatprep.subr.bf16.mxu0 0
    %501 = vmatpush2.bf16.msra.mxu0 0
    %502 = vmatprep.subr.bf16.mxu0 0
    %503 = vmatpush2.bf16.msra.mxu0 0
    %504 = vmatprep.subr.bf16.mxu0 0
    %505 = vmatpush2.bf16.msra.mxu0 0
    %506 = vmatprep.subr.bf16.mxu0 0
    %507 = vmatpush2.bf16.msra.mxu0 0
    %508 = vmatprep.subr.bf16.mxu0 0
    %509 = vmatpush2.bf16.msra.mxu0 0
    %510 = vmatprep.subr.bf16.mxu0 0
    %511 = vmatpush2.bf16.msra.mxu0 0
    %512 = vmatprep.subr.bf16.mxu0 0
    %513 = vmatpush2.bf16.msra.mxu0 0
    %514 = vmatprep.mubr.bf16.mxu0 0
    %515 = vmatmul.mubr.bf16.gmra.mxu0 %v418
    %v516 = vpop.f32.mrf.mxu0
    %v517 = vadd.f32 0.0, %v516
    %v518 = vpop.f32.mrf.mxu0
    %v519 = vpop.f32.mrf.mxu0
    %v520 = vadd.f32 0.0, %v519
    %v521 = vpop.f32.mrf.mxu0
    %522 = vmatprep.mubr.bf16.mxu0 0
    %523 = vmatmul.mubr.bf16.gmra.mxu0 %v419
    %v524 = vpop.f32.mrf.mxu0
    %v525 = vadd.f32 0.0, %v524
    %v526 = vpop.f32.mrf.mxu0
    %v527 = vpop.f32.mrf.mxu0
    %v528 = vadd.f32 0.0, %v527
    %v529 = vpop.f32.mrf.mxu0
    %530 = vmatprep.mubr.bf16.mxu0 0
    %531 = vmatmul.mubr.bf16.gmra.mxu0 %v420
    %v532 = vpop.f32.mrf.mxu0
    %v533 = vadd.f32 0.0, %v532
    %v534 = vpop.f32.mrf.mxu0
    %v535 = vpop.f32.mrf.mxu0
    %v536 = vadd.f32 0.0, %v535
    %v537 = vpop.f32.mrf.mxu0
    %538 = vmatprep.mubr.bf16.mxu0 0
    %539 = vmatmul.mubr.bf16.gmra.mxu0 %v421
    %v540 = vpop.f32.mrf.mxu0
    %v541 = vadd.f32 0.0, %v540
    %v542 = vpop.f32.mrf.mxu0
    %v543 = vpop.f32.mrf.mxu0
    %v544 = vadd.f32 0.0, %v543
    %v545 = vpop.f32.mrf.mxu0
    %546 = vmatprep.mubr.bf16.mxu0 0
    %547 = vmatmul.mubr.bf16.gmra.mxu0 %v422
    %v548 = vpop.f32.mrf.mxu0
    %v549 = vadd.f32 0.0, %v548
    %v550 = vpop.f32.mrf.mxu0
    %v551 = vpop.f32.mrf.mxu0
    %v552 = vadd.f32 0.0, %v551
    %v553 = vpop.f32.mrf.mxu0
    %554 = vmatprep.mubr.bf16.mxu0 0
    %555 = vmatmul.mubr.bf16.gmra.mxu0 %v423
    %v556 = vpop.f32.mrf.mxu0
    %v557 = vadd.f32 0.0, %v556
    %v558 = vpop.f32.mrf.mxu0
    %v559 = vpop.f32.mrf.mxu0
    %v560 = vadd.f32 0.0, %v559
    %v561 = vpop.f32.mrf.mxu0
    %562 = vmatprep.mubr.bf16.mxu0 0
    %563 = vmatmul.mubr.bf16.gmra.mxu0 %v424
    %v564 = vpop.f32.mrf.mxu0
    %v565 = vadd.f32 0.0, %v564
    %v566 = vpop.f32.mrf.mxu0
    %v567 = vpop.f32.mrf.mxu0
    %v568 = vadd.f32 0.0, %v567
    %v569 = vpop.f32.mrf.mxu0
    %570 = vmatprep.mubr.bf16.mxu0 0
    %571 = vmatmul.mubr.bf16.gmra.mxu0 %v425
    %v572 = vpop.f32.mrf.mxu0
    %v573 = vadd.f32 0.0, %v572
    %v574 = vpop.f32.mrf.mxu0
    %v575 = vpop.f32.mrf.mxu0
    %v576 = vadd.f32 0.0, %v575
    %v577 = vpop.f32.mrf.mxu0
    %578 = vdwg.mxu0
    %p579 = scmp.eq.s32.totalorder 0, 0
    // Predicated region
    $region62: #{tpu_custom_call.1} parent=1 // pred_check
      %p580 = pneg %p579
    $region63: #{tpu_custom_call.1} parent=1 // pred_check_branch
      %582 = sbr.rel (%p580) target = $region65
    $region64: #{tpu_custom_call.1} parent=1 // pred_region
      %583 = vst [vmem:[#allocation2] sm:$0xff] %v292
      %584 = vst [vmem:[#allocation2 + $0x8] sm:$0xff] %v295
      %585 = vst [vmem:[#allocation2 + $0x10] sm:$0xff] %v300
      %586 = vst [vmem:[#allocation2 + $0x18] sm:$0xff] %v303
      %587 = vst [vmem:[#allocation2 + $0x20] sm:$0xff] %v308
      %588 = vst [vmem:[#allocation2 + $0x28] sm:$0xff] %v311
      %589 = vst [vmem:[#allocation2 + $0x30] sm:$0xff] %v316
      %590 = vst [vmem:[#allocation2 + $0x38] sm:$0xff] %v319
      %591 = vst [vmem:[#allocation2 + $0x40] sm:$0xff] %v324
      %592 = vst [vmem:[#allocation2 + $0x48] sm:$0xff] %v327
      %593 = vst [vmem:[#allocation2 + $0x50] sm:$0xff] %v332
      %594 = vst [vmem:[#allocation2 + $0x58] sm:$0xff] %v335
      %595 = vst [vmem:[#allocation2 + $0x60] sm:$0xff] %v340
      %596 = vst [vmem:[#allocation2 + $0x68] sm:$0xff] %v343
      %597 = vst [vmem:[#allocation2 + $0x70] sm:$0xff] %v348
      %598 = vst [vmem:[#allocation2 + $0x78] sm:$0xff] %v351
      %599 = vst [vmem:[#allocation3] sm:$0xff] %v517
      %600 = vst [vmem:[#allocation3 + $0x8] sm:$0xff] %v520
      %601 = vst [vmem:[#allocation3 + $0x10] sm:$0xff] %v525
      %602 = vst [vmem:[#allocation3 + $0x18] sm:$0xff] %v528
      %603 = vst [vmem:[#allocation3 + $0x20] sm:$0xff] %v533
      %604 = vst [vmem:[#allocation3 + $0x28] sm:$0xff] %v536
      %605 = vst [vmem:[#allocation3 + $0x30] sm:$0xff] %v541
      %606 = vst [vmem:[#allocation3 + $0x38] sm:$0xff] %v544
      %607 = vst [vmem:[#allocation3 + $0x40] sm:$0xff] %v549
      %608 = vst [vmem:[#allocation3 + $0x48] sm:$0xff] %v552
      %609 = vst [vmem:[#allocation3 + $0x50] sm:$0xff] %v557
      %610 = vst [vmem:[#allocation3 + $0x58] sm:$0xff] %v560
      %611 = vst [vmem:[#allocation3 + $0x60] sm:$0xff] %v565
      %612 = vst [vmem:[#allocation3 + $0x68] sm:$0xff] %v568
      %613 = vst [vmem:[#allocation3 + $0x70] sm:$0xff] %v573
      %614 = vst [vmem:[#allocation3 + $0x78] sm:$0xff] %v576
    $region65: #{tpu_custom_call.1} parent=1 // pred_fallthru
      _
    %p615 = scmp.ne.s32.totalorder 0, 0
    // Predicated region
    $region66: #{tpu_custom_call.1} parent=1 // pred_check
      %p616 = pneg %p615
    $region67: #{tpu_custom_call.1} parent=1 // pred_check_branch
      %618 = sbr.rel (%p616) target = $region69
    $region68: #{tpu_custom_call.1} parent=1 // pred_region
      %v619 = vld [vmem:[#allocation2] sm:$0xff]
      %v620 = vld [vmem:[#allocation2 + $0x8] sm:$0xff]
      %v621 = vld [vmem:[#allocation2 + $0x10] sm:$0xff]
      %v622 = vld [vmem:[#allocation2 + $0x18] sm:$0xff]
      %v623 = vld [vmem:[#allocation2 + $0x20] sm:$0xff]
      %v624 = vld [vmem:[#allocation2 + $0x28] sm:$0xff]
      %v625 = vld [vmem:[#allocation2 + $0x30] sm:$0xff]
      %v626 = vld [vmem:[#allocation2 + $0x38] sm:$0xff]
      %v627 = vld [vmem:[#allocation2 + $0x40] sm:$0xff]
      %v628 = vld [vmem:[#allocation2 + $0x48] sm:$0xff]
      %v629 = vld [vmem:[#allocation2 + $0x50] sm:$0xff]
      %v630 = vld [vmem:[#allocation2 + $0x58] sm:$0xff]
      %v631 = vld [vmem:[#allocation2 + $0x60] sm:$0xff]
      %v632 = vld [vmem:[#allocation2 + $0x68] sm:$0xff]
      %v633 = vld [vmem:[#allocation2 + $0x70] sm:$0xff]
      %v634 = vld [vmem:[#allocation2 + $0x78] sm:$0xff]
      %v635 = vadd.f32 %v619, %v292
      %v636 = vadd.f32 %v620, %v295
      %v637 = vadd.f32 %v621, %v300
      %v638 = vadd.f32 %v622, %v303
      %v639 = vadd.f32 %v623, %v308
      %v640 = vadd.f32 %v624, %v311
      %v641 = vadd.f32 %v625, %v316
      %v642 = vadd.f32 %v626, %v319
      %v643 = vadd.f32 %v627, %v324
      %v644 = vadd.f32 %v628, %v327
      %v645 = vadd.f32 %v629, %v332
      %v646 = vadd.f32 %v630, %v335
      %v647 = vadd.f32 %v631, %v340
      %v648 = vadd.f32 %v632, %v343
      %v649 = vadd.f32 %v633, %v348
      %v650 = vadd.f32 %v634, %v351
      %651 = vst [vmem:[#allocation2] sm:$0xff] %v635
      %652 = vst [vmem:[#allocation2 + $0x8] sm:$0xff] %v636
      %653 = vst [vmem:[#allocation2 + $0x10] sm:$0xff] %v637
      %654 = vst [vmem:[#allocation2 + $0x18] sm:$0xff] %v638
      %655 = vst [vmem:[#allocation2 + $0x20] sm:$0xff] %v639
      %656 = vst [vmem:[#allocation2 + $0x28] sm:$0xff] %v640
      %657 = vst [vmem:[#allocation2 + $0x30] sm:$0xff] %v641
      %658 = vst [vmem:[#allocation2 + $0x38] sm:$0xff] %v642
      %659 = vst [vmem:[#allocation2 + $0x40] sm:$0xff] %v643
      %660 = vst [vmem:[#allocation2 + $0x48] sm:$0xff] %v644
      %661 = vst [vmem:[#allocation2 + $0x50] sm:$0xff] %v645
      %662 = vst [vmem:[#allocation2 + $0x58] sm:$0xff] %v646
      %663 = vst [vmem:[#allocation2 + $0x60] sm:$0xff] %v647
      %664 = vst [vmem:[#allocation2 + $0x68] sm:$0xff] %v648
      %665 = vst [vmem:[#allocation2 + $0x70] sm:$0xff] %v649
      %666 = vst [vmem:[#allocation2 + $0x78] sm:$0xff] %v650
      %v667 = vld [vmem:[#allocation3] sm:$0xff]
      %v668 = vld [vmem:[#allocation3 + $0x8] sm:$0xff]
      %v669 = vld [vmem:[#allocation3 + $0x10] sm:$0xff]
      %v670 = vld [vmem:[#allocation3 + $0x18] sm:$0xff]
      %v671 = vld [vmem:[#allocation3 + $0x20] sm:$0xff]
      %v672 = vld [vmem:[#allocation3 + $0x28] sm:$0xff]
      %v673 = vld [vmem:[#allocation3 + $0x30] sm:$0xff]
      %v674 = vld [vmem:[#allocation3 + $0x38] sm:$0xff]
      %v675 = vld [vmem:[#allocation3 + $0x40] sm:$0xff]
      %v676 = vld [vmem:[#allocation3 + $0x48] sm:$0xff]
      %v677 = vld [vmem:[#allocation3 + $0x50] sm:$0xff]
      %v678 = vld [vmem:[#allocation3 + $0x58] sm:$0xff]
      %v679 = vld [vmem:[#allocation3 + $0x60] sm:$0xff]
      %v680 = vld [vmem:[#allocation3 + $0x68] sm:$0xff]
      %v681 = vld [vmem:[#allocation3 + $0x70] sm:$0xff]
      %v682 = vld [vmem:[#allocation3 + $0x78] sm:$0xff]
      %v683 = vadd.f32 %v667, %v517
      %v684 = vadd.f32 %v668, %v520
      %v685 = vadd.f32 %v669, %v525
      %v686 = vadd.f32 %v670, %v528
      %v687 = vadd.f32 %v671, %v533
      %v688 = vadd.f32 %v672, %v536
      %v689 = vadd.f32 %v673, %v541
      %v690 = vadd.f32 %v674, %v544
      %v691 = vadd.f32 %v675, %v549
      %v692 = vadd.f32 %v676, %v552
      %v693 = vadd.f32 %v677, %v557
      %v694 = vadd.f32 %v678, %v560
      %v695 = vadd.f32 %v679, %v565
      %v696 = vadd.f32 %v680, %v568
      %v697 = vadd.f32 %v681, %v573
      %v698 = vadd.f32 %v682, %v576
      %699 = vst [vmem:[#allocation3] sm:$0xff] %v683
      %700 = vst [vmem:[#allocation3 + $0x8] sm:$0xff] %v684
      %701 = vst [vmem:[#allocation3 + $0x10] sm:$0xff] %v685
      %702 = vst [vmem:[#allocation3 + $0x18] sm:$0xff] %v686
      %703 = vst [vmem:[#allocation3 + $0x20] sm:$0xff] %v687
      %704 = vst [vmem:[#allocation3 + $0x28] sm:$0xff] %v688
      %705 = vst [vmem:[#allocation3 + $0x30] sm:$0xff] %v689
      %706 = vst [vmem:[#allocation3 + $0x38] sm:$0xff] %v690
      %707 = vst [vmem:[#allocation3 + $0x40] sm:$0xff] %v691
      %708 = vst [vmem:[#allocation3 + $0x48] sm:$0xff] %v692
      %709 = vst [vmem:[#allocation3 + $0x50] sm:$0xff] %v693
      %710 = vst [vmem:[#allocation3 + $0x58] sm:$0xff] %v694
      %711 = vst [vmem:[#allocation3 + $0x60] sm:$0xff] %v695
      %712 = vst [vmem:[#allocation3 + $0x68] sm:$0xff] %v696
      %713 = vst [vmem:[#allocation3 + $0x70] sm:$0xff] %v697
      %714 = vst [vmem:[#allocation3 + $0x78] sm:$0xff] %v698
    $region69: #{tpu_custom_call.1} parent=1 // pred_fallthru
      _
    // Predicated region
    $region70: #{tpu_custom_call.1} parent=1 // pred_check
      %p715 = pneg %p579
    $region71: #{tpu_custom_call.1} parent=1 // pred_check_branch
      %717 = sbr.rel (%p715) target = $region73
    $region72: #{tpu_custom_call.1} parent=1 // pred_region
      %v718 = vld [vmem:[#allocation15] sm:$0xf]
      %v719 = vld [vmem:[#allocation15 + $0x4] sm:$0xf]
      %v720 = vld [vmem:[#allocation15 + $0x8] sm:$0xf]
      %v721 = vld [vmem:[#allocation15 + $0xc] sm:$0xf]
      %v722 = vld [vmem:[#allocation15 + $0x10] sm:$0xf]
      %v723 = vld [vmem:[#allocation15 + $0x14] sm:$0xf]
      %v724 = vld [vmem:[#allocation15 + $0x18] sm:$0xf]
      %v725 = vld [vmem:[#allocation15 + $0x1c] sm:$0xf]
      %v726 = vld [vmem:[#allocation15 + $0x20] sm:$0xf]
      %v727 = vld [vmem:[#allocation15 + $0x24] sm:$0xf]
      %v728 = vld [vmem:[#allocation15 + $0x28] sm:$0xf]
      %v729 = vld [vmem:[#allocation15 + $0x2c] sm:$0xf]
      %v730 = vld [vmem:[#allocation15 + $0x30] sm:$0xf]
      %v731 = vld [vmem:[#allocation15 + $0x34] sm:$0xf]
      %v732 = vld [vmem:[#allocation15 + $0x38] sm:$0xf]
      %v733 = vld [vmem:[#allocation15 + $0x3c] sm:$0xf]
      %v734 = vld [vmem:[#allocation15 + $0x40] sm:$0xf]
      %v735 = vld [vmem:[#allocation15 + $0x44] sm:$0xf]
      %v736 = vld [vmem:[#allocation15 + $0x48] sm:$0xf]
      %v737 = vld [vmem:[#allocation15 + $0x4c] sm:$0xf]
      %v738 = vld [vmem:[#allocation15 + $0x50] sm:$0xf]
      %v739 = vld [vmem:[#allocation15 + $0x54] sm:$0xf]
      %v740 = vld [vmem:[#allocation15 + $0x58] sm:$0xf]
      %v741 = vld [vmem:[#allocation15 + $0x5c] sm:$0xf]
      %v742 = vld [vmem:[#allocation15 + $0x60] sm:$0xf]
      %v743 = vld [vmem:[#allocation15 + $0x64] sm:$0xf]
      %v744 = vld [vmem:[#allocation15 + $0x68] sm:$0xf]
      %v745 = vld [vmem:[#allocation15 + $0x6c] sm:$0xf]
      %v746 = vld [vmem:[#allocation15 + $0x70] sm:$0xf]
      %v747 = vld [vmem:[#allocation15 + $0x74] sm:$0xf]
      %v748 = vld [vmem:[#allocation15 + $0x78] sm:$0xf]
      %v749 = vld [vmem:[#allocation15 + $0x7c] sm:$0xf]
      %v750 = vld [vmem:[#allocation12] sm:$0xf]
      %v751 = vld [vmem:[#allocation12 + $0x4] sm:$0xf]
      %v752 = vld [vmem:[#allocation12 + $0x8] sm:$0xf]
      %v753 = vld [vmem:[#allocation12 + $0xc] sm:$0xf]
      %v754 = vld [vmem:[#allocation12 + $0x10] sm:$0xf]
      %v755 = vld [vmem:[#allocation12 + $0x14] sm:$0xf]
      %v756 = vld [vmem:[#allocation12 + $0x18] sm:$0xf]
      %v757 = vld [vmem:[#allocation12 + $0x1c] sm:$0xf]
      %v758 = vld [vmem:[#allocation12 + $0x20] sm:$0xf]
      %v759 = vld [vmem:[#allocation12 + $0x24] sm:$0xf]
      %v760 = vld [vmem:[#allocation12 + $0x28] sm:$0xf]
      %v761 = vld [vmem:[#allocation12 + $0x2c] sm:$0xf]
      %v762 = vld [vmem:[#allocation12 + $0x30] sm:$0xf]
      %v763 = vld [vmem:[#allocation12 + $0x34] sm:$0xf]
      %v764 = vld [vmem:[#allocation12 + $0x38] sm:$0xf]
      %v765 = vld [vmem:[#allocation12 + $0x3c] sm:$0xf]
      %v766 = vld [vmem:[#allocation2] sm:$0xff]
      %v767 = vld [vmem:[#allocation2 + $0x8] sm:$0xff]
      %v768 = vld [vmem:[#allocation2 + $0x10] sm:$0xff]
      %v769 = vld [vmem:[#allocation2 + $0x18] sm:$0xff]
      %v770 = vld [vmem:[#allocation2 + $0x20] sm:$0xff]
      %v771 = vld [vmem:[#allocation2 + $0x28] sm:$0xff]
      %v772 = vld [vmem:[#allocation2 + $0x30] sm:$0xff]
      %v773 = vld [vmem:[#allocation2 + $0x38] sm:$0xff]
      %v774 = vld [vmem:[#allocation2 + $0x40] sm:$0xff]
      %v775 = vld [vmem:[#allocation2 + $0x48] sm:$0xff]
      %v776 = vld [vmem:[#allocation2 + $0x50] sm:$0xff]
      %v777 = vld [vmem:[#allocation2 + $0x58] sm:$0xff]
      %v778 = vld [vmem:[#allocation2 + $0x60] sm:$0xff]
      %v779 = vld [vmem:[#allocation2 + $0x68] sm:$0xff]
      %v780 = vld [vmem:[#allocation2 + $0x70] sm:$0xff]
      %v781 = vld [vmem:[#allocation2 + $0x78] sm:$0xff]
      %v782 = vpack.c.bf16 %v767, %v766
      %v783 = vpack.c.bf16 %v769, %v768
      %v784 = vpack.c.bf16 %v771, %v770
      %v785 = vpack.c.bf16 %v773, %v772
      %v786 = vpack.c.bf16 %v775, %v774
      %v787 = vpack.c.bf16 %v777, %v776
      %v788 = vpack.c.bf16 %v779, %v778
      %v789 = vpack.c.bf16 %v781, %v780
      %v806 = vunpack.c.l.b16 %v734
      %v807 = vunpack.c.l.b16 %v735
      %v808 = vunpack.c.l.b16 %v736
      %v809 = vunpack.c.l.b16 %v737
      %v810 = vunpack.c.l.b16 %v738
      %v811 = vunpack.c.l.b16 %v739
      %v812 = vunpack.c.l.b16 %v740
      %v813 = vunpack.c.l.b16 %v741
      %v814 = vunpack.c.l.b16 %v742
      %v815 = vunpack.c.l.b16 %v743
      %v816 = vunpack.c.l.b16 %v744
      %v817 = vunpack.c.l.b16 %v745
      %v818 = vunpack.c.l.b16 %v746
      %v819 = vunpack.c.l.b16 %v747
      %v820 = vunpack.c.l.b16 %v748
      %v821 = vunpack.c.l.b16 %v749
      %v822 = vpack.c.b16 %v807, %v806
      %v823 = vpack.c.b16 %v809, %v808
      %v824 = vpack.c.b16 %v811, %v810
      %v825 = vpack.c.b16 %v813, %v812
      %v826 = vpack.c.b16 %v815, %v814
      %v827 = vpack.c.b16 %v817, %v816
      %v828 = vpack.c.b16 %v819, %v818
      %v829 = vpack.c.b16 %v821, %v820
      %838 = vmatprep.subr.bf16.mxu0 0
      %839 = vmatpush1.bf16.msra.mxu0 %v829
      %840 = vmatprep.subr.bf16.mxu0 0
      %841 = vmatpush1.bf16.msra.mxu0 %v828
      %842 = vmatprep.subr.bf16.mxu0 0
      %843 = vmatpush1.bf16.msra.mxu0 %v827
      %844 = vmatprep.subr.bf16.mxu0 0
      %845 = vmatpush1.bf16.msra.mxu0 %v826
      %846 = vmatprep.subr.bf16.mxu0 0
      %847 = vmatpush1.bf16.msra.mxu0 %v825
      %848 = vmatprep.subr.bf16.mxu0 0
      %849 = vmatpush1.bf16.msra.mxu0 %v824
      %850 = vmatprep.subr.bf16.mxu0 0
      %851 = vmatpush1.bf16.msra.mxu0 %v823
      %852 = vmatprep.subr.bf16.mxu0 0
      %853 = vmatpush1.bf16.msra.mxu0 %v822
      %854 = vmatprep.subr.bf16.mxu0 0
      %855 = vmatpush2.bf16.msra.mxu0 0
      %856 = vmatprep.subr.bf16.mxu0 0
      %857 = vmatpush2.bf16.msra.mxu0 0
      %858 = vmatprep.subr.bf16.mxu0 0
      %859 = vmatpush2.bf16.msra.mxu0 0
      %860 = vmatprep.subr.bf16.mxu0 0
      %861 = vmatpush2.bf16.msra.mxu0 0
      %862 = vmatprep.subr.bf16.mxu0 0
      %863 = vmatpush2.bf16.msra.mxu0 0
      %864 = vmatprep.subr.bf16.mxu0 0
      %865 = vmatpush2.bf16.msra.mxu0 0
      %866 = vmatprep.subr.bf16.mxu0 0
      %867 = vmatpush2.bf16.msra.mxu0 0
      %868 = vmatprep.subr.bf16.mxu0 0
      %869 = vmatpush2.bf16.msra.mxu0 0
      %870 = vmatprep.mubr.bf16.mxu0 0
      %871 = vmatmul.mubr.bf16.gmra.mxu0 %v782
      %v872 = vpop.f32.mrf.mxu0
      %v873 = vadd.f32 0.0, %v872
      %v874 = vpop.f32.mrf.mxu0
      %v875 = vpop.f32.mrf.mxu0
      %v876 = vadd.f32 0.0, %v875
      %v877 = vpop.f32.mrf.mxu0
      %878 = vmatprep.mubr.bf16.mxu0 0
      %879 = vmatmul.mubr.bf16.gmra.mxu0 %v783
      %v880 = vpop.f32.mrf.mxu0
      %v881 = vadd.f32 0.0, %v880
      %v882 = vpop.f32.mrf.mxu0
      %v883 = vpop.f32.mrf.mxu0
      %v884 = vadd.f32 0.0, %v883
      %v885 = vpop.f32.mrf.mxu0
      %886 = vmatprep.mubr.bf16.mxu0 0
      %887 = vmatmul.mubr.bf16.gmra.mxu0 %v784
      %v888 = vpop.f32.mrf.mxu0
      %v889 = vadd.f32 0.0, %v888
      %v890 = vpop.f32.mrf.mxu0
      %v891 = vpop.f32.mrf.mxu0
      %v892 = vadd.f32 0.0, %v891
      %v893 = vpop.f32.mrf.mxu0
      %894 = vmatprep.mubr.bf16.mxu0 0
      %895 = vmatmul.mubr.bf16.gmra.mxu0 %v785
      %v896 = vpop.f32.mrf.mxu0
      %v897 = vadd.f32 0.0, %v896
      %v898 = vpop.f32.mrf.mxu0
      %v899 = vpop.f32.mrf.mxu0
      %v900 = vadd.f32 0.0, %v899
      %v901 = vpop.f32.mrf.mxu0
      %902 = vmatprep.mubr.bf16.mxu0 0
      %903 = vmatmul.mubr.bf16.gmra.mxu0 %v786
      %v904 = vpop.f32.mrf.mxu0
      %v905 = vadd.f32 0.0, %v904
      %v906 = vpop.f32.mrf.mxu0
      %v907 = vpop.f32.mrf.mxu0
      %v908 = vadd.f32 0.0, %v907
      %v909 = vpop.f32.mrf.mxu0
      %910 = vmatprep.mubr.bf16.mxu0 0
      %911 = vmatmul.mubr.bf16.gmra.mxu0 %v787
      %v912 = vpop.f32.mrf.mxu0
      %v913 = vadd.f32 0.0, %v912
      %v914 = vpop.f32.mrf.mxu0
      %v915 = vpop.f32.mrf.mxu0
      %v916 = vadd.f32 0.0, %v915
      %v917 = vpop.f32.mrf.mxu0
      %918 = vmatprep.mubr.bf16.mxu0 0
      %919 = vmatmul.mubr.bf16.gmra.mxu0 %v788
      %v920 = vpop.f32.mrf.mxu0
      %v921 = vadd.f32 0.0, %v920
      %v922 = vpop.f32.mrf.mxu0
      %v923 = vpop.f32.mrf.mxu0
      %v924 = vadd.f32 0.0, %v923
      %v925 = vpop.f32.mrf.mxu0
      %926 = vmatprep.mubr.bf16.mxu0 0
      %927 = vmatmul.mubr.bf16.gmra.mxu0 %v789
      %v928 = vpop.f32.mrf.mxu0
      %v929 = vadd.f32 0.0, %v928
      %v930 = vpop.f32.mrf.mxu0
      %v931 = vpop.f32.mrf.mxu0
      %v932 = vadd.f32 0.0, %v931
      %v933 = vpop.f32.mrf.mxu0
      %934 = vdwg.mxu0
      %v951 = vunpack.c.l.b16 %v750
      %v952 = vunpack.c.l.b16 %v751
      %v953 = vunpack.c.l.b16 %v752
      %v954 = vunpack.c.l.b16 %v753
      %v955 = vunpack.c.l.b16 %v754
      %v956 = vunpack.c.l.b16 %v755
      %v957 = vunpack.c.l.b16 %v756
      %v958 = vunpack.c.l.b16 %v757
      %v959 = vunpack.c.l.b16 %v758
      %v960 = vunpack.c.l.b16 %v759
      %v961 = vunpack.c.l.b16 %v760
      %v962 = vunpack.c.l.b16 %v761
      %v963 = vunpack.c.l.b16 %v762
      %v964 = vunpack.c.l.b16 %v763
      %v965 = vunpack.c.l.b16 %v764
      %v966 = vunpack.c.l.b16 %v765
      %v967 = vpack.c.b16 %v952, %v951
      %v968 = vpack.c.b16 %v954, %v953
      %v969 = vpack.c.b16 %v956, %v955
      %v970 = vpack.c.b16 %v958, %v957
      %v971 = vpack.c.b16 %v960, %v959
      %v972 = vpack.c.b16 %v962, %v961
      %v973 = vpack.c.b16 %v964, %v963
      %v974 = vpack.c.b16 %v966, %v965
      %v999 = vunpack.c.l.b16 %v718
      %v1000 = vunpack.c.l.b16 %v719
      %v1001 = vunpack.c.l.b16 %v720
      %v1002 = vunpack.c.l.b16 %v721
      %v1003 = vunpack.c.l.b16 %v722
      %v1004 = vunpack.c.l.b16 %v723
      %v1005 = vunpack.c.l.b16 %v724
      %v1006 = vunpack.c.l.b16 %v725
      %v1007 = vunpack.c.l.b16 %v726
      %v1008 = vunpack.c.l.b16 %v727
      %v1009 = vunpack.c.l.b16 %v728
      %v1010 = vunpack.c.l.b16 %v729
      %v1011 = vunpack.c.l.b16 %v730
      %v1012 = vunpack.c.l.b16 %v731
      %v1013 = vunpack.c.l.b16 %v732
      %v1014 = vunpack.c.l.b16 %v733
      %v1015 = vpack.c.b16 %v1000, %v999
      %v1016 = vpack.c.b16 %v1002, %v1001
      %v1017 = vpack.c.b16 %v1004, %v1003
      %v1018 = vpack.c.b16 %v1006, %v1005
      %v1019 = vpack.c.b16 %v1008, %v1007
      %v1020 = vpack.c.b16 %v1010, %v1009
      %v1021 = vpack.c.b16 %v1012, %v1011
      %v1022 = vpack.c.b16 %v1014, %v1013
      %1031 = vmatprep.subr.bf16.mxu0 0
      %1032 = vmatpush1.bf16.msra.mxu0 %v1022
      %1033 = vmatprep.subr.bf16.mxu0 0
      %1034 = vmatpush1.bf16.msra.mxu0 %v1021
      %1035 = vmatprep.subr.bf16.mxu0 0
      %1036 = vmatpush1.bf16.msra.mxu0 %v1020
      %1037 = vmatprep.subr.bf16.mxu0 0
      %1038 = vmatpush1.bf16.msra.mxu0 %v1019
      %1039 = vmatprep.subr.bf16.mxu0 0
      %1040 = vmatpush1.bf16.msra.mxu0 %v1018
      %1041 = vmatprep.subr.bf16.mxu0 0
      %1042 = vmatpush1.bf16.msra.mxu0 %v1017
      %1043 = vmatprep.subr.bf16.mxu0 0
      %1044 = vmatpush1.bf16.msra.mxu0 %v1016
      %1045 = vmatprep.subr.bf16.mxu0 0
      %1046 = vmatpush1.bf16.msra.mxu0 %v1015
      %1047 = vmatprep.subr.bf16.mxu0 0
      %1048 = vmatpush2.bf16.msra.mxu0 0
      %1049 = vmatprep.subr.bf16.mxu0 0
      %1050 = vmatpush2.bf16.msra.mxu0 0
      %1051 = vmatprep.subr.bf16.mxu0 0
      %1052 = vmatpush2.bf16.msra.mxu0 0
      %1053 = vmatprep.subr.bf16.mxu0 0
      %1054 = vmatpush2.bf16.msra.mxu0 0
      %1055 = vmatprep.subr.bf16.mxu0 0
      %1056 = vmatpush2.bf16.msra.mxu0 0
      %1057 = vmatprep.subr.bf16.mxu0 0
      %1058 = vmatpush2.bf16.msra.mxu0 0
      %1059 = vmatprep.subr.bf16.mxu0 0
      %1060 = vmatpush2.bf16.msra.mxu0 0
      %1061 = vmatprep.subr.bf16.mxu0 0
      %1062 = vmatpush2.bf16.msra.mxu0 0
      %1063 = vmatprep.mubr.bf16.mxu0 0
      %1064 = vmatmul.mubr.bf16.gmra.mxu0 %v967
      %v1065 = vpop.f32.mrf.mxu0
      %v1066 = vadd.f32 %v873, %v1065
      %v1067 = vpop.f32.mrf.mxu0
      %v1068 = vpop.f32.mrf.mxu0
      %v1069 = vadd.f32 %v876, %v1068
      %v1070 = vpop.f32.mrf.mxu0
      %1071 = vmatprep.mubr.bf16.mxu0 0
      %1072 = vmatmul.mubr.bf16.gmra.mxu0 %v968
      %v1073 = vpop.f32.mrf.mxu0
      %v1074 = vadd.f32 %v881, %v1073
      %v1075 = vpop.f32.mrf.mxu0
      %v1076 = vpop.f32.mrf.mxu0
      %v1077 = vadd.f32 %v884, %v1076
      %v1078 = vpop.f32.mrf.mxu0
      %1079 = vmatprep.mubr.bf16.mxu0 0
      %1080 = vmatmul.mubr.bf16.gmra.mxu0 %v969
      %v1081 = vpop.f32.mrf.mxu0
      %v1082 = vadd.f32 %v889, %v1081
      %v1083 = vpop.f32.mrf.mxu0
      %v1084 = vpop.f32.mrf.mxu0
      %v1085 = vadd.f32 %v892, %v1084
      %v1086 = vpop.f32.mrf.mxu0
      %1087 = vmatprep.mubr.bf16.mxu0 0
      %1088 = vmatmul.mubr.bf16.gmra.mxu0 %v970
      %v1089 = vpop.f32.mrf.mxu0
      %v1090 = vadd.f32 %v897, %v1089
      %v1091 = vpop.f32.mrf.mxu0
      %v1092 = vpop.f32.mrf.mxu0
      %v1093 = vadd.f32 %v900, %v1092
      %v1094 = vpop.f32.mrf.mxu0
      %1095 = vmatprep.mubr.bf16.mxu0 0
      %1096 = vmatmul.mubr.bf16.gmra.mxu0 %v971
      %v1097 = vpop.f32.mrf.mxu0
      %v1098 = vadd.f32 %v905, %v1097
      %v1099 = vpop.f32.mrf.mxu0
      %v1100 = vpop.f32.mrf.mxu0
      %v1101 = vadd.f32 %v908, %v1100
      %v1102 = vpop.f32.mrf.mxu0
      %1103 = vmatprep.mubr.bf16.mxu0 0
      %1104 = vmatmul.mubr.bf16.gmra.mxu0 %v972
      %v1105 = vpop.f32.mrf.mxu0
      %v1106 = vadd.f32 %v913, %v1105
      %v1107 = vpop.f32.mrf.mxu0
      %v1108 = vpop.f32.mrf.mxu0
      %v1109 = vadd.f32 %v916, %v1108
      %v1110 = vpop.f32.mrf.mxu0
      %1111 = vmatprep.mubr.bf16.mxu0 0
      %1112 = vmatmul.mubr.bf16.gmra.mxu0 %v973
      %v1113 = vpop.f32.mrf.mxu0
      %v1114 = vadd.f32 %v921, %v1113
      %v1115 = vpop.f32.mrf.mxu0
      %v1116 = vpop.f32.mrf.mxu0
      %v1117 = vadd.f32 %v924, %v1116
      %v1118 = vpop.f32.mrf.mxu0
      %1119 = vmatprep.mubr.bf16.mxu0 0
      %1120 = vmatmul.mubr.bf16.gmra.mxu0 %v974
      %v1121 = vpop.f32.mrf.mxu0
      %v1122 = vadd.f32 %v929, %v1121
      %v1123 = vpop.f32.mrf.mxu0
      %v1124 = vpop.f32.mrf.mxu0
      %v1125 = vadd.f32 %v932, %v1124
      %v1126 = vpop.f32.mrf.mxu0
      %1127 = vdwg.mxu0
      %v1128 = vld [vmem:[#allocation13] sm:$0xf]
      %v1129 = vld [vmem:[#allocation13 + $0x4] sm:$0xf]
      %v1130 = vld [vmem:[#allocation13 + $0x8] sm:$0xf]
      %v1131 = vld [vmem:[#allocation13 + $0xc] sm:$0xf]
      %v1132 = vld [vmem:[#allocation13 + $0x10] sm:$0xf]
      %v1133 = vld [vmem:[#allocation13 + $0x14] sm:$0xf]
      %v1134 = vld [vmem:[#allocation13 + $0x18] sm:$0xf]
      %v1135 = vld [vmem:[#allocation13 + $0x1c] sm:$0xf]
      %v1136 = vld [vmem:[#allocation13 + $0x20] sm:$0xf]
      %v1137 = vld [vmem:[#allocation13 + $0x24] sm:$0xf]
      %v1138 = vld [vmem:[#allocation13 + $0x28] sm:$0xf]
      %v1139 = vld [vmem:[#allocation13 + $0x2c] sm:$0xf]
      %v1140 = vld [vmem:[#allocation13 + $0x30] sm:$0xf]
      %v1141 = vld [vmem:[#allocation13 + $0x34] sm:$0xf]
      %v1142 = vld [vmem:[#allocation13 + $0x38] sm:$0xf]
      %v1143 = vld [vmem:[#allocation13 + $0x3c] sm:$0xf]
      %v1144 = vld [vmem:[#allocation3] sm:$0xff]
      %v1145 = vld [vmem:[#allocation3 + $0x8] sm:$0xff]
      %v1146 = vld [vmem:[#allocation3 + $0x10] sm:$0xff]
      %v1147 = vld [vmem:[#allocation3 + $0x18] sm:$0xff]
      %v1148 = vld [vmem:[#allocation3 + $0x20] sm:$0xff]
      %v1149 = vld [vmem:[#allocation3 + $0x28] sm:$0xff]
      %v1150 = vld [vmem:[#allocation3 + $0x30] sm:$0xff]
      %v1151 = vld [vmem:[#allocation3 + $0x38] sm:$0xff]
      %v1152 = vld [vmem:[#allocation3 + $0x40] sm:$0xff]
      %v1153 = vld [vmem:[#allocation3 + $0x48] sm:$0xff]
      %v1154 = vld [vmem:[#allocation3 + $0x50] sm:$0xff]
      %v1155 = vld [vmem:[#allocation3 + $0x58] sm:$0xff]
      %v1156 = vld [vmem:[#allocation3 + $0x60] sm:$0xff]
      %v1157 = vld [vmem:[#allocation3 + $0x68] sm:$0xff]
      %v1158 = vld [vmem:[#allocation3 + $0x70] sm:$0xff]
      %v1159 = vld [vmem:[#allocation3 + $0x78] sm:$0xff]
      %v1160 = vpack.c.bf16 %v1145, %v1144
      %v1161 = vpack.c.bf16 %v1147, %v1146
      %v1162 = vpack.c.bf16 %v1149, %v1148
      %v1163 = vpack.c.bf16 %v1151, %v1150
      %v1164 = vpack.c.bf16 %v1153, %v1152
      %v1165 = vpack.c.bf16 %v1155, %v1154
      %v1166 = vpack.c.bf16 %v1157, %v1156
      %v1167 = vpack.c.bf16 %v1159, %v1158
      %1168 = vmatprep.subr.bf16.mxu0 0
      %1169 = vmatpush1.bf16.msra.mxu0 %v829
      %1170 = vmatprep.subr.bf16.mxu0 0
      %1171 = vmatpush1.bf16.msra.mxu0 %v828
      %1172 = vmatprep.subr.bf16.mxu0 0
      %1173 = vmatpush1.bf16.msra.mxu0 %v827
      %1174 = vmatprep.subr.bf16.mxu0 0
      %1175 = vmatpush1.bf16.msra.mxu0 %v826
      %1176 = vmatprep.subr.bf16.mxu0 0
      %1177 = vmatpush1.bf16.msra.mxu0 %v825
      %1178 = vmatprep.subr.bf16.mxu0 0
      %1179 = vmatpush1.bf16.msra.mxu0 %v824
      %1180 = vmatprep.subr.bf16.mxu0 0
      %1181 = vmatpush1.bf16.msra.mxu0 %v823
      %1182 = vmatprep.subr.bf16.mxu0 0
      %1183 = vmatpush1.bf16.msra.mxu0 %v822
      %1184 = vmatprep.subr.bf16.mxu0 0
      %1185 = vmatpush2.bf16.msra.mxu0 0
      %1186 = vmatprep.subr.bf16.mxu0 0
      %1187 = vmatpush2.bf16.msra.mxu0 0
      %1188 = vmatprep.subr.bf16.mxu0 0
      %1189 = vmatpush2.bf16.msra.mxu0 0
      %1190 = vmatprep.subr.bf16.mxu0 0
      %1191 = vmatpush2.bf16.msra.mxu0 0
      %1192 = vmatprep.subr.bf16.mxu0 0
      %1193 = vmatpush2.bf16.msra.mxu0 0
      %1194 = vmatprep.subr.bf16.mxu0 0
      %1195 = vmatpush2.bf16.msra.mxu0 0
      %1196 = vmatprep.subr.bf16.mxu0 0
      %1197 = vmatpush2.bf16.msra.mxu0 0
      %1198 = vmatprep.subr.bf16.mxu0 0
      %1199 = vmatpush2.bf16.msra.mxu0 0
      %1200 = vmatprep.mubr.bf16.mxu0 0
      %1201 = vmatmul.mubr.bf16.gmra.mxu0 %v1160
      %v1202 = vpop.f32.mrf.mxu0
      %v1203 = vadd.f32 0.0, %v1202
      %v1204 = vpop.f32.mrf.mxu0
      %v1205 = vpop.f32.mrf.mxu0
      %v1206 = vadd.f32 0.0, %v1205
      %v1207 = vpop.f32.mrf.mxu0
      %1208 = vmatprep.mubr.bf16.mxu0 0
      %1209 = vmatmul.mubr.bf16.gmra.mxu0 %v1161
      %v1210 = vpop.f32.mrf.mxu0
      %v1211 = vadd.f32 0.0, %v1210
      %v1212 = vpop.f32.mrf.mxu0
      %v1213 = vpop.f32.mrf.mxu0
      %v1214 = vadd.f32 0.0, %v1213
      %v1215 = vpop.f32.mrf.mxu0
      %1216 = vmatprep.mubr.bf16.mxu0 0
      %1217 = vmatmul.mubr.bf16.gmra.mxu0 %v1162
      %v1218 = vpop.f32.mrf.mxu0
      %v1219 = vadd.f32 0.0, %v1218
      %v1220 = vpop.f32.mrf.mxu0
      %v1221 = vpop.f32.mrf.mxu0
      %v1222 = vadd.f32 0.0, %v1221
      %v1223 = vpop.f32.mrf.mxu0
      %1224 = vmatprep.mubr.bf16.mxu0 0
      %1225 = vmatmul.mubr.bf16.gmra.mxu0 %v1163
      %v1226 = vpop.f32.mrf.mxu0
      %v1227 = vadd.f32 0.0, %v1226
      %v1228 = vpop.f32.mrf.mxu0
      %v1229 = vpop.f32.mrf.mxu0
      %v1230 = vadd.f32 0.0, %v1229
      %v1231 = vpop.f32.mrf.mxu0
      %1232 = vmatprep.mubr.bf16.mxu0 0
      %1233 = vmatmul.mubr.bf16.gmra.mxu0 %v1164
      %v1234 = vpop.f32.mrf.mxu0
      %v1235 = vadd.f32 0.0, %v1234
      %v1236 = vpop.f32.mrf.mxu0
      %v1237 = vpop.f32.mrf.mxu0
      %v1238 = vadd.f32 0.0, %v1237
      %v1239 = vpop.f32.mrf.mxu0
      %1240 = vmatprep.mubr.bf16.mxu0 0
      %1241 = vmatmul.mubr.bf16.gmra.mxu0 %v1165
      %v1242 = vpop.f32.mrf.mxu0
      %v1243 = vadd.f32 0.0, %v1242
      %v1244 = vpop.f32.mrf.mxu0
      %v1245 = vpop.f32.mrf.mxu0
      %v1246 = vadd.f32 0.0, %v1245
      %v1247 = vpop.f32.mrf.mxu0
      %1248 = vmatprep.mubr.bf16.mxu0 0
      %1249 = vmatmul.mubr.bf16.gmra.mxu0 %v1166
      %v1250 = vpop.f32.mrf.mxu0
      %v1251 = vadd.f32 0.0, %v1250
      %v1252 = vpop.f32.mrf.mxu0
      %v1253 = vpop.f32.mrf.mxu0
      %v1254 = vadd.f32 0.0, %v1253
      %v1255 = vpop.f32.mrf.mxu0
      %1256 = vmatprep.mubr.bf16.mxu0 0
      %1257 = vmatmul.mubr.bf16.gmra.mxu0 %v1167
      %v1258 = vpop.f32.mrf.mxu0
      %v1259 = vadd.f32 0.0, %v1258
      %v1260 = vpop.f32.mrf.mxu0
      %v1261 = vpop.f32.mrf.mxu0
      %v1262 = vadd.f32 0.0, %v1261
      %v1263 = vpop.f32.mrf.mxu0
      %1264 = vdwg.mxu0
      %v1281 = vunpack.c.l.b16 %v1128
      %v1282 = vunpack.c.l.b16 %v1129
      %v1283 = vunpack.c.l.b16 %v1130
      %v1284 = vunpack.c.l.b16 %v1131
      %v1285 = vunpack.c.l.b16 %v1132
      %v1286 = vunpack.c.l.b16 %v1133
      %v1287 = vunpack.c.l.b16 %v1134
      %v1288 = vunpack.c.l.b16 %v1135
      %v1289 = vunpack.c.l.b16 %v1136
      %v1290 = vunpack.c.l.b16 %v1137
      %v1291 = vunpack.c.l.b16 %v1138
      %v1292 = vunpack.c.l.b16 %v1139
      %v1293 = vunpack.c.l.b16 %v1140
      %v1294 = vunpack.c.l.b16 %v1141
      %v1295 = vunpack.c.l.b16 %v1142
      %v1296 = vunpack.c.l.b16 %v1143
      %v1297 = vpack.c.b16 %v1282, %v1281
      %v1298 = vpack.c.b16 %v1284, %v1283
      %v1299 = vpack.c.b16 %v1286, %v1285
      %v1300 = vpack.c.b16 %v1288, %v1287
      %v1301 = vpack.c.b16 %v1290, %v1289
      %v1302 = vpack.c.b16 %v1292, %v1291
      %v1303 = vpack.c.b16 %v1294, %v1293
      %v1304 = vpack.c.b16 %v1296, %v1295
      %1313 = vmatprep.subr.bf16.mxu0 0
      %1314 = vmatpush1.bf16.msra.mxu0 %v1022
      %1315 = vmatprep.subr.bf16.mxu0 0
      %1316 = vmatpush1.bf16.msra.mxu0 %v1021
      %1317 = vmatprep.subr.bf16.mxu0 0
      %1318 = vmatpush1.bf16.msra.mxu0 %v1020
      %1319 = vmatprep.subr.bf16.mxu0 0
      %1320 = vmatpush1.bf16.msra.mxu0 %v1019
      %1321 = vmatprep.subr.bf16.mxu0 0
      %1322 = vmatpush1.bf16.msra.mxu0 %v1018
      %1323 = vmatprep.subr.bf16.mxu0 0
      %1324 = vmatpush1.bf16.msra.mxu0 %v1017
      %1325 = vmatprep.subr.bf16.mxu0 0
      %1326 = vmatpush1.bf16.msra.mxu0 %v1016
      %1327 = vmatprep.subr.bf16.mxu0 0
      %1328 = vmatpush1.bf16.msra.mxu0 %v1015
      %1329 = vmatprep.subr.bf16.mxu0 0
      %1330 = vmatpush2.bf16.msra.mxu0 0
      %1331 = vmatprep.subr.bf16.mxu0 0
      %1332 = vmatpush2.bf16.msra.mxu0 0
      %1333 = vmatprep.subr.bf16.mxu0 0
      %1334 = vmatpush2.bf16.msra.mxu0 0
      %1335 = vmatprep.subr.bf16.mxu0 0
      %1336 = vmatpush2.bf16.msra.mxu0 0
      %1337 = vmatprep.subr.bf16.mxu0 0
      %1338 = vmatpush2.bf16.msra.mxu0 0
      %1339 = vmatprep.subr.bf16.mxu0 0
      %1340 = vmatpush2.bf16.msra.mxu0 0
      %1341 = vmatprep.subr.bf16.mxu0 0
      %1342 = vmatpush2.bf16.msra.mxu0 0
      %1343 = vmatprep.subr.bf16.mxu0 0
      %1344 = vmatpush2.bf16.msra.mxu0 0
      %1345 = vmatprep.mubr.bf16.mxu0 0
      %1346 = vmatmul.mubr.bf16.gmra.mxu0 %v1297
      %v1347 = vpop.f32.mrf.mxu0
      %v1348 = vadd.f32 %v1203, %v1347
      %v1349 = vpop.f32.mrf.mxu0
      %v1350 = vpop.f32.mrf.mxu0
      %v1351 = vadd.f32 %v1206, %v1350
      %v1352 = vpop.f32.mrf.mxu0
      %1353 = vmatprep.mubr.bf16.mxu0 0
      %1354 = vmatmul.mubr.bf16.gmra.mxu0 %v1298
      %v1355 = vpop.f32.mrf.mxu0
      %v1356 = vadd.f32 %v1211, %v1355
      %v1357 = vpop.f32.mrf.mxu0
      %v1358 = vpop.f32.mrf.mxu0
      %v1359 = vadd.f32 %v1214, %v1358
      %v1360 = vpop.f32.mrf.mxu0
      %1361 = vmatprep.mubr.bf16.mxu0 0
      %1362 = vmatmul.mubr.bf16.gmra.mxu0 %v1299
      %v1363 = vpop.f32.mrf.mxu0
      %v1364 = vadd.f32 %v1219, %v1363
      %v1365 = vpop.f32.mrf.mxu0
      %v1366 = vpop.f32.mrf.mxu0
      %v1367 = vadd.f32 %v1222, %v1366
      %v1368 = vpop.f32.mrf.mxu0
      %1369 = vmatprep.mubr.bf16.mxu0 0
      %1370 = vmatmul.mubr.bf16.gmra.mxu0 %v1300
      %v1371 = vpop.f32.mrf.mxu0
      %v1372 = vadd.f32 %v1227, %v1371
      %v1373 = vpop.f32.mrf.mxu0
      %v1374 = vpop.f32.mrf.mxu0
      %v1375 = vadd.f32 %v1230, %v1374
      %v1376 = vpop.f32.mrf.mxu0
      %1377 = vmatprep.mubr.bf16.mxu0 0
      %1378 = vmatmul.mubr.bf16.gmra.mxu0 %v1301
      %v1379 = vpop.f32.mrf.mxu0
      %v1380 = vadd.f32 %v1235, %v1379
      %v1381 = vpop.f32.mrf.mxu0
      %v1382 = vpop.f32.mrf.mxu0
      %v1383 = vadd.f32 %v1238, %v1382
      %v1384 = vpop.f32.mrf.mxu0
      %1385 = vmatprep.mubr.bf16.mxu0 0
      %1386 = vmatmul.mubr.bf16.gmra.mxu0 %v1302
      %v1387 = vpop.f32.mrf.mxu0
      %v1388 = vadd.f32 %v1243, %v1387
      %v1389 = vpop.f32.mrf.mxu0
      %v1390 = vpop.f32.mrf.mxu0
      %v1391 = vadd.f32 %v1246, %v1390
      %v1392 = vpop.f32.mrf.mxu0
      %1393 = vmatprep.mubr.bf16.mxu0 0
      %1394 = vmatmul.mubr.bf16.gmra.mxu0 %v1303
      %v1395 = vpop.f32.mrf.mxu0
      %v1396 = vadd.f32 %v1251, %v1395
      %v1397 = vpop.f32.mrf.mxu0
      %v1398 = vpop.f32.mrf.mxu0
      %v1399 = vadd.f32 %v1254, %v1398
      %v1400 = vpop.f32.mrf.mxu0
      %1401 = vmatprep.mubr.bf16.mxu0 0
      %1402 = vmatmul.mubr.bf16.gmra.mxu0 %v1304
      %v1403 = vpop.f32.mrf.mxu0
      %v1404 = vadd.f32 %v1259, %v1403
      %v1405 = vpop.f32.mrf.mxu0
      %v1406 = vpop.f32.mrf.mxu0
      %v1407 = vadd.f32 %v1262, %v1406
      %v1408 = vpop.f32.mrf.mxu0
      %1409 = vdwg.mxu0
      %v1410 = vld [vmem:[%s7] sm:$0x1]
      %v1411 = vsub.f32 %v1066, %v1348
      %v1412 = vsub.f32 %v1069, %v1351
      %v1413 = vsub.f32 %v1074, %v1356
      %v1414 = vsub.f32 %v1077, %v1359
      %v1415 = vsub.f32 %v1082, %v1364
      %v1416 = vsub.f32 %v1085, %v1367
      %v1417 = vsub.f32 %v1090, %v1372
      %v1418 = vsub.f32 %v1093, %v1375
      %v1419 = vsub.f32 %v1098, %v1380
      %v1420 = vsub.f32 %v1101, %v1383
      %v1421 = vsub.f32 %v1106, %v1388
      %v1422 = vsub.f32 %v1109, %v1391
      %v1423 = vsub.f32 %v1114, %v1396
      %v1424 = vsub.f32 %v1117, %v1399
      %v1425 = vsub.f32 %v1122, %v1404
      %v1426 = vsub.f32 %v1125, %v1407
      %v1428 = vlaneseq
      %v1429 = vshrl.u32 %v1428, 7
      %v1430 = vsub.s32 0, %v1429
      %v1431 = vrot.slane %v1410, %v1430
      %v1433 = vadd.f32 %v1411, %v1431
      %v1434 = vadd.f32 %v1412, %v1431
      %v1435 = vadd.f32 %v1413, %v1431
      %v1436 = vadd.f32 %v1414, %v1431
      %v1437 = vadd.f32 %v1415, %v1431
      %v1438 = vadd.f32 %v1416, %v1431
      %v1439 = vadd.f32 %v1417, %v1431
      %v1440 = vadd.f32 %v1418, %v1431
      %v1441 = vadd.f32 %v1419, %v1431
      %v1442 = vadd.f32 %v1420, %v1431
      %v1443 = vadd.f32 %v1421, %v1431
      %v1444 = vadd.f32 %v1422, %v1431
      %v1445 = vadd.f32 %v1423, %v1431
      %v1446 = vadd.f32 %v1424, %v1431
      %v1447 = vadd.f32 %v1425, %v1431
      %v1448 = vadd.f32 %v1426, %v1431
      %v1449 = vadd.f32 %v1066, %v1348
      %v1450 = vadd.f32 %v1069, %v1351
      %v1451 = vadd.f32 %v1074, %v1356
      %v1452 = vadd.f32 %v1077, %v1359
      %v1453 = vadd.f32 %v1082, %v1364
      %v1454 = vadd.f32 %v1085, %v1367
      %v1455 = vadd.f32 %v1090, %v1372
      %v1456 = vadd.f32 %v1093, %v1375
      %v1457 = vadd.f32 %v1098, %v1380
      %v1458 = vadd.f32 %v1101, %v1383
      %v1459 = vadd.f32 %v1106, %v1388
      %v1460 = vadd.f32 %v1109, %v1391
      %v1461 = vadd.f32 %v1114, %v1396
      %v1462 = vadd.f32 %v1117, %v1399
      %v1463 = vadd.f32 %v1122, %v1404
      %v1464 = vadd.f32 %v1125, %v1407
      %v1465 = vadd.f32 %v1449, %v1431
      %v1466 = vadd.f32 %v1450, %v1431
      %v1467 = vadd.f32 %v1451, %v1431
      %v1468 = vadd.f32 %v1452, %v1431
      %v1469 = vadd.f32 %v1453, %v1431
      %v1470 = vadd.f32 %v1454, %v1431
      %v1471 = vadd.f32 %v1455, %v1431
      %v1472 = vadd.f32 %v1456, %v1431
      %v1473 = vadd.f32 %v1457, %v1431
      %v1474 = vadd.f32 %v1458, %v1431
      %v1475 = vadd.f32 %v1459, %v1431
      %v1476 = vadd.f32 %v1460, %v1431
      %v1477 = vadd.f32 %v1461, %v1431
      %v1478 = vadd.f32 %v1462, %v1431
      %v1479 = vadd.f32 %v1463, %v1431
      %v1480 = vadd.f32 %v1464, %v1431
      %vm1481 = vcmp.ge.f32.partialorder %v1433, 0.0
      %vm1482 = vcmp.ge.f32.partialorder %v1434, 0.0
      %vm1483 = vcmp.ge.f32.partialorder %v1435, 0.0
      %vm1484 = vcmp.ge.f32.partialorder %v1436, 0.0
      %vm1485 = vcmp.ge.f32.partialorder %v1437, 0.0
      %vm1486 = vcmp.ge.f32.partialorder %v1438, 0.0
      %vm1487 = vcmp.ge.f32.partialorder %v1439, 0.0
      %vm1488 = vcmp.ge.f32.partialorder %v1440, 0.0
      %vm1489 = vcmp.ge.f32.partialorder %v1441, 0.0
      %vm1490 = vcmp.ge.f32.partialorder %v1442, 0.0
      %vm1491 = vcmp.ge.f32.partialorder %v1443, 0.0
      %vm1492 = vcmp.ge.f32.partialorder %v1444, 0.0
      %vm1493 = vcmp.ge.f32.partialorder %v1445, 0.0
      %vm1494 = vcmp.ge.f32.partialorder %v1446, 0.0
      %vm1495 = vcmp.ge.f32.partialorder %v1447, 0.0
      %vm1496 = vcmp.ge.f32.partialorder %v1448, 0.0
      %v1497 = vsel %vm1481, %v1433, 0.0
      %v1498 = vsel %vm1482, %v1434, 0.0
      %v1499 = vsel %vm1483, %v1435, 0.0
      %v1500 = vsel %vm1484, %v1436, 0.0
      %v1501 = vsel %vm1485, %v1437, 0.0
      %v1502 = vsel %vm1486, %v1438, 0.0
      %v1503 = vsel %vm1487, %v1439, 0.0
      %v1504 = vsel %vm1488, %v1440, 0.0
      %v1505 = vsel %vm1489, %v1441, 0.0
      %v1506 = vsel %vm1490, %v1442, 0.0
      %v1507 = vsel %vm1491, %v1443, 0.0
      %v1508 = vsel %vm1492, %v1444, 0.0
      %v1509 = vsel %vm1493, %v1445, 0.0
      %v1510 = vsel %vm1494, %v1446, 0.0
      %v1511 = vsel %vm1495, %v1447, 0.0
      %v1512 = vsel %vm1496, %v1448, 0.0
      %v1513 = vsel %vm1481, %v1465, 0.0
      %v1514 = vsel %vm1482, %v1466, 0.0
      %v1515 = vsel %vm1483, %v1467, 0.0
      %v1516 = vsel %vm1484, %v1468, 0.0
      %v1517 = vsel %vm1485, %v1469, 0.0
      %v1518 = vsel %vm1486, %v1470, 0.0
      %v1519 = vsel %vm1487, %v1471, 0.0
      %v1520 = vsel %vm1488, %v1472, 0.0
      %v1521 = vsel %vm1489, %v1473, 0.0
      %v1522 = vsel %vm1490, %v1474, 0.0
      %v1523 = vsel %vm1491, %v1475, 0.0
      %v1524 = vsel %vm1492, %v1476, 0.0
      %v1525 = vsel %vm1493, %v1477, 0.0
      %v1526 = vsel %vm1494, %v1478, 0.0
      %v1527 = vsel %vm1495, %v1479, 0.0
      %v1528 = vsel %vm1496, %v1480, 0.0
      %v1529 = vpack.c.bf16 %v1498, %v1497
      %v1530 = vpack.c.bf16 %v1500, %v1499
      %v1531 = vpack.c.bf16 %v1502, %v1501
      %v1532 = vpack.c.bf16 %v1504, %v1503
      %v1533 = vpack.c.bf16 %v1506, %v1505
      %v1534 = vpack.c.bf16 %v1508, %v1507
      %v1535 = vpack.c.bf16 %v1510, %v1509
      %v1536 = vpack.c.bf16 %v1512, %v1511
      %v1545 = vunpack.c.l.b16 %v1529
      %v1546 = vunpack.c.h.b16 %v1529
      %v1547 = vunpack.c.l.b16 %v1530
      %v1548 = vunpack.c.h.b16 %v1530
      %v1549 = vunpack.c.l.b16 %v1531
      %v1550 = vunpack.c.h.b16 %v1531
      %v1551 = vunpack.c.l.b16 %v1532
      %v1552 = vunpack.c.h.b16 %v1532
      %v1553 = vunpack.c.l.b16 %v1533
      %v1554 = vunpack.c.h.b16 %v1533
      %v1555 = vunpack.c.l.b16 %v1534
      %v1556 = vunpack.c.h.b16 %v1534
      %v1557 = vunpack.c.l.b16 %v1535
      %v1558 = vunpack.c.h.b16 %v1535
      %v1559 = vunpack.c.l.b16 %v1536
      %v1560 = vunpack.c.h.b16 %v1536
      %v1561 = vpack.c.b16 %v1545, %v1545
      %v1562 = vpack.c.b16 %v1546, %v1546
      %v1563 = vpack.c.b16 %v1547, %v1547
      %v1564 = vpack.c.b16 %v1548, %v1548
      %v1565 = vpack.c.b16 %v1549, %v1549
      %v1566 = vpack.c.b16 %v1550, %v1550
      %v1567 = vpack.c.b16 %v1551, %v1551
      %v1568 = vpack.c.b16 %v1552, %v1552
      %v1569 = vpack.c.b16 %v1553, %v1553
      %v1570 = vpack.c.b16 %v1554, %v1554
      %v1571 = vpack.c.b16 %v1555, %v1555
      %v1572 = vpack.c.b16 %v1556, %v1556
      %v1573 = vpack.c.b16 %v1557, %v1557
      %v1574 = vpack.c.b16 %v1558, %v1558
      %v1575 = vpack.c.b16 %v1559, %v1559
      %v1576 = vpack.c.b16 %v1560, %v1560
      %1593 = vst [vmem:[#allocation16] sm:$0xf] %v1561
      %1594 = vst [vmem:[#allocation16 + $0x4] sm:$0xf] %v1562
      %1595 = vst [vmem:[#allocation16 + $0x8] sm:$0xf] %v1563
      %1596 = vst [vmem:[#allocation16 + $0xc] sm:$0xf] %v1564
      %1597 = vst [vmem:[#allocation16 + $0x10] sm:$0xf] %v1565
      %1598 = vst [vmem:[#allocation16 + $0x14] sm:$0xf] %v1566
      %1599 = vst [vmem:[#allocation16 + $0x18] sm:$0xf] %v1567
      %1600 = vst [vmem:[#allocation16 + $0x1c] sm:$0xf] %v1568
      %1601 = vst [vmem:[#allocation16 + $0x20] sm:$0xf] %v1569
      %1602 = vst [vmem:[#allocation16 + $0x24] sm:$0xf] %v1570
      %1603 = vst [vmem:[#allocation16 + $0x28] sm:$0xf] %v1571
      %1604 = vst [vmem:[#allocation16 + $0x2c] sm:$0xf] %v1572
      %1605 = vst [vmem:[#allocation16 + $0x30] sm:$0xf] %v1573
      %1606 = vst [vmem:[#allocation16 + $0x34] sm:$0xf] %v1574
      %1607 = vst [vmem:[#allocation16 + $0x38] sm:$0xf] %v1575
      %1608 = vst [vmem:[#allocation16 + $0x3c] sm:$0xf] %v1576
      %v1609 = vpack.c.bf16 %v1514, %v1513
      %v1610 = vpack.c.bf16 %v1516, %v1515
      %v1611 = vpack.c.bf16 %v1518, %v1517
      %v1612 = vpack.c.bf16 %v1520, %v1519
      %v1613 = vpack.c.bf16 %v1522, %v1521
      %v1614 = vpack.c.bf16 %v1524, %v1523
      %v1615 = vpack.c.bf16 %v1526, %v1525
      %v1616 = vpack.c.bf16 %v1528, %v1527
      %v1625 = vunpack.c.l.b16 %v1609
      %v1626 = vunpack.c.h.b16 %v1609
      %v1627 = vunpack.c.l.b16 %v1610
      %v1628 = vunpack.c.h.b16 %v1610
      %v1629 = vunpack.c.l.b16 %v1611
      %v1630 = vunpack.c.h.b16 %v1611
      %v1631 = vunpack.c.l.b16 %v1612
      %v1632 = vunpack.c.h.b16 %v1612
      %v1633 = vunpack.c.l.b16 %v1613
      %v1634 = vunpack.c.h.b16 %v1613
      %v1635 = vunpack.c.l.b16 %v1614
      %v1636 = vunpack.c.h.b16 %v1614
      %v1637 = vunpack.c.l.b16 %v1615
      %v1638 = vunpack.c.h.b16 %v1615
      %v1639 = vunpack.c.l.b16 %v1616
      %v1640 = vunpack.c.h.b16 %v1616
      %v1641 = vpack.c.b16 %v1625, %v1625
      %v1642 = vpack.c.b16 %v1626, %v1626
      %v1643 = vpack.c.b16 %v1627, %v1627
      %v1644 = vpack.c.b16 %v1628, %v1628
      %v1645 = vpack.c.b16 %v1629, %v1629
      %v1646 = vpack.c.b16 %v1630, %v1630
      %v1647 = vpack.c.b16 %v1631, %v1631
      %v1648 = vpack.c.b16 %v1632, %v1632
      %v1649 = vpack.c.b16 %v1633, %v1633
      %v1650 = vpack.c.b16 %v1634, %v1634
      %v1651 = vpack.c.b16 %v1635, %v1635
      %v1652 = vpack.c.b16 %v1636, %v1636
      %v1653 = vpack.c.b16 %v1637, %v1637
      %v1654 = vpack.c.b16 %v1638, %v1638
      %v1655 = vpack.c.b16 %v1639, %v1639
      %v1656 = vpack.c.b16 %v1640, %v1640
      %1673 = vst [vmem:[#allocation17] sm:$0xf] %v1641
      %1674 = vst [vmem:[#allocation17 + $0x4] sm:$0xf] %v1642
      %1675 = vst [vmem:[#allocation17 + $0x8] sm:$0xf] %v1643
      %1676 = vst [vmem:[#allocation17 + $0xc] sm:$0xf] %v1644
      %1677 = vst [vmem:[#allocation17 + $0x10] sm:$0xf] %v1645
      %1678 = vst [vmem:[#allocation17 + $0x14] sm:$0xf] %v1646
      %1679 = vst [vmem:[#allocation17 + $0x18] sm:$0xf] %v1647
      %1680 = vst [vmem:[#allocation17 + $0x1c] sm:$0xf] %v1648
      %1681 = vst [vmem:[#allocation17 + $0x20] sm:$0xf] %v1649
      %1682 = vst [vmem:[#allocation17 + $0x24] sm:$0xf] %v1650
      %1683 = vst [vmem:[#allocation17 + $0x28] sm:$0xf] %v1651
      %1684 = vst [vmem:[#allocation17 + $0x2c] sm:$0xf] %v1652
      %1685 = vst [vmem:[#allocation17 + $0x30] sm:$0xf] %v1653
      %1686 = vst [vmem:[#allocation17 + $0x34] sm:$0xf] %v1654
      %1687 = vst [vmem:[#allocation17 + $0x38] sm:$0xf] %v1655
      %1688 = vst [vmem:[#allocation17 + $0x3c] sm:$0xf] %v1656
    $region73: #{tpu_custom_call.1} parent=1 // pred_fallthru
      _
    // Predicated region
    $region74: #{tpu_custom_call.1} parent=1 // pred_check
      _
    $region75: #{tpu_custom_call.1} parent=1 // pred_check_branch
      %1690 = sbr.rel (0) target = $region77
    $region76: #{tpu_custom_call.1} parent=1 // pred_region
      %s1692 = ssub.s32 1024, 1024
      %1693 = vsyncadd [#allocation6], %s1692
      %s1694 = sshll.u32 [#allocation16], 4
      %s1695 = int_to_ptr.vmem [resolvable:$true] %s1694
      %1700 = dma.vmem_to_hbm [thread:$0]  %s1695, 1024, %s8, [#allocation6], 64, 64, 4
    $region77: #{tpu_custom_call.1} parent=1 // pred_fallthru
      _
    // Predicated region
    $region78: #{tpu_custom_call.1} parent=1 // pred_check
      _
    $region79: #{tpu_custom_call.1} parent=1 // pred_check_branch
      %1702 = sbr.rel (0) target = $region81
    $region80: #{tpu_custom_call.1} parent=1 // pred_region
      %s1704 = ssub.s32 1024, 1024
      %1705 = vsyncadd [#allocation18], %s1704
      %s1706 = sshll.u32 [#allocation17], 4
      %s1707 = int_to_ptr.vmem [resolvable:$true] %s1706
      %1712 = dma.vmem_to_hbm [thread:$0]  %s1707, 1024, %s9, [#allocation18], 64, 64, 4
    $region81: #{tpu_custom_call.1} parent=1 // pred_fallthru
      _
    // Predicated region
    $region82: #{tpu_custom_call.1} parent=1 // pred_check
      _
    $region83: #{tpu_custom_call.1} parent=1 // pred_check_branch
      %1714 = sbr.rel (0) target = $region85
    $region84: #{tpu_custom_call.1} parent=1 // pred_region
      %1715 = dma.done [#allocation6], 1024
    $region85: #{tpu_custom_call.1} parent=1 // pred_fallthru
      _
    // Predicated region
    $region86: #{tpu_custom_call.1} parent=1 // pred_check
      _
    $region87: #{tpu_custom_call.1} parent=1 // pred_check_branch
      %1717 = sbr.rel (0) target = $region89
    $region88: #{tpu_custom_call.1} parent=1 // pred_region
      %1718 = dma.done [#allocation18], 1024
    $region89: #{tpu_custom_call.1} parent=1 // pred_fallthru
      _
    %1719 = vsyncpa [#allocation5], 1
    %1720 = vsyncpa [#allocation8], 1
    %1721 = vsyncpa [#allocation11], 1
    %1722 = vsyncpa [#allocation14], 1
    %1723 = vsyncpa [#allocation6], 1
    %1724 = vsyncpa [#allocation18], 1

</llo_original>
